<compile_context>
chip_gen: v7x
topology: tpu7x:2x2x1
jax: 0.10.0
libtpu: 0.0.40
codegen_flags: <defaults>
</compile_context>

<pallas_src>
import functools

import jax
import jax.numpy as jnp
from jax.experimental import pallas as pl
from jax.experimental.pallas import tpu as pltpu

SELU_ALPHA = 1.6732632423543772
SELU_SCALE = 1.0507009873554805


def _selu(x):
    # scale * (x if x > 0 else alpha * (exp(x) - 1)); exp arg clamped so the
    # unselected branch never produces inf/NaN.
    neg = SELU_ALPHA * (jnp.exp(jnp.minimum(x, 0.0)) - 1.0)
    return SELU_SCALE * jnp.where(x > 0, x, neg)


def _round_up(v, m):
    return ((v + m - 1) // m) * m


# ---------------------------------------------------------------------------
# Single-buffering (pl.Buffered(1)) support probe — keeps the script running
# cleanly on jax versions where pipeline_mode is unavailable.
# ---------------------------------------------------------------------------
@functools.lru_cache(maxsize=1)
def _single_buffer_supported():
    if not hasattr(pl, "Buffered"):
        return False
    try:
        spec = pl.BlockSpec((8, 128), lambda i: (0, 0),
                            pipeline_mode=pl.Buffered(1))
    except TypeError:
        return False
    try:
        def _probe(x_ref, o_ref):
            o_ref[...] = x_ref[...] + 1.0

        x = jnp.zeros((8, 128), jnp.float32)
        out = pl.pallas_call(
            _probe,
            out_shape=jax.ShapeDtypeStruct((16, 128), jnp.float32),
            grid=(2,),
            in_specs=[spec],
            out_specs=pl.BlockSpec((8, 128), lambda i: (i, 0)),
        )(x)
        jax.block_until_ready(out)
        return True
    except Exception:
        return False


def _spec(shape, index_map, *, single_buffer=False):
    """BlockSpec, optionally single-buffered (grid-invariant operands)."""
    if single_buffer and _single_buffer_supported():
        try:
            return pl.BlockSpec(shape, index_map, pipeline_mode=pl.Buffered(1))
        except TypeError:
            pass
    return pl.BlockSpec(shape, index_map)


# ---------------------------------------------------------------------------
# Tile / VMEM planning (generation-aware).
# ---------------------------------------------------------------------------
def plan_tiles(N, D, H, num_layers, *, use_bf16=True, a_storage_dtype=None,
               tn=256, vmem_cap=None):
    """Choose (tn, tk, nk) from the chip's VMEM capacity.

    tn >= 256 keeps the row-tile axis >= 2 entries (v7x megacore) for N >= 512.
    tk is grown until the A stream uses the available VMEM; usually tk == Np
    so the contraction grid axis collapses entirely.
    """
    mm_dtype = jnp.bfloat16 if use_bf16 else jnp.float32
    mm_bpe = jnp.dtype(mm_dtype).itemsize
    a_dtype = jnp.dtype(a_storage_dtype) if a_storage_dtype is not None \
        else jnp.dtype(mm_dtype)
    a_bpe = a_dtype.itemsize

    Hp = _round_up(H, 128)        # lane-dense output / hidden width
    Np = _round_up(N, tn)

    if vmem_cap is None:
        vmem_cap = 64 * 1024 * 1024          # conservative fallback (v7x)
        try:
            info = pltpu.get_tpu_info()
            cap = getattr(info, "vmem_capacity_bytes", None)
            if cap:
                vmem_cap = int(cap)
        except Exception:
            pass
    # ~78% of physical VMEM: ≈50 MiB headroomed cap on v7x, ≈100 MiB on
    # v5e/v6e (no artificial 64 MiB ceiling any more).
    budget = int(0.78 * vmem_cap)

    # Fixed (non-A) VMEM costs.
    w_bytes = (D * Hp + max(num_layers - 1, 0) * Hp * Hp) * mm_bpe  # Buffered(1)
    b_bytes = num_layers * Hp * 4
    out_bytes = 2 * tn * Hp * 4
    res_bytes = 2 * tn * D * 4                 # f32 residual row-tile stream
    acc_bytes = tn * D * 4                     # only used when nk > 1
    epi_bytes = 4 * tn * Hp * 4 + tn * max(D, Hp) * 4   # epilogue temporaries

    x_full_bytes = Np * D * 4
    x_resident = x_full_bytes <= budget // 4   # keep x well under 1/4 of VMEM
    x_bytes = x_full_bytes if x_resident else 0

    fixed = w_bytes + b_bytes + out_bytes + res_bytes + acc_bytes + epi_bytes \
        + x_bytes
    a_budget = budget - fixed

    # Per-column cost of the A stream: 2 pipeline buffers of the storage dtype
    # plus one in-kernel upcast temporary when storage dtype != MXU dtype.
    col = tn * (2 * a_bpe + (mm_bpe if a_dtype != jnp.dtype(mm_dtype) else 0))
    if not x_resident:
        col += 2 * D * 4 + D * mm_bpe          # streamed (tk, D) x + cast temp
    tk_max = (max(a_budget, col * tn) // col) // tn * tn
    tk_max = max(tk_max, tn)

    if tk_max >= Np:
        tk, nk = Np, 1                          # k axis collapses entirely
    else:
        m = Np // tn
        # largest divisor c of m with c*tn <= tk_max keeps Np unchanged
        c = max(c for c in range(1, m + 1) if m % c == 0 and c * tn <= tk_max)
        tk, nk = c * tn, m // c

    return dict(tn=tn, tk=tk, nk=nk, Np=Np, Hp=Hp, D=D, H=H,
                num_layers=num_layers, mm_dtype=mm_dtype, a_dtype=a_dtype,
                x_resident=x_resident, vmem_limit=budget)


def prepare_adjacency(A, plan):
    """Pad + cast the dense adjacency ONCE; reuse across forward calls.

    For 0/1 adjacencies int8 (or bf16) storage is exact; for general spmm
    values use float32 (or bf16 and accept rounding)."""
    N = A.shape[0]
    Np = plan["Np"]
    out = jnp.zeros((Np, Np), plan["a_dtype"])
    return out.at[:N, :N].set(A.astype(plan["a_dtype"]))


# ---------------------------------------------------------------------------
# Kernel.
# ---------------------------------------------------------------------------
def _make_kernel(*, num_layers, tn, tk, nk, x_resident, mm_dtype):
    def kernel(*refs):
        # refs = (a, xk, xres, w0, b0, ..., out [, acc])
        a_ref, xk_ref, xres_ref = refs[0], refs[1], refs[2]
        wb = refs[3:3 + 2 * num_layers]
        out_ref = refs[3 + 2 * num_layers]

        # Contraction chunk of x for this k step.
        if x_resident and nk > 1:
            k = pl.program_id(1)
            off = pl.multiple_of(k * tk, tk)
            xk = xk_ref[pl.ds(off, tk), :]
        else:
            xk = xk_ref[...]

        # Aggregation partial product on the MXU, f32 accumulate.  A stored
        # compactly (e.g. int8) is upcast on the VPU here — never feed int8
        # to the MXU directly (v7x MXU is bf16/fp8 only).
        partial = jnp.dot(a_ref[...].astype(mm_dtype), xk.astype(mm_dtype),
                          preferred_element_type=jnp.float32)

        def epilogue(agg_f32):
            # Residual add in exact f32, then the fused MLP stack (unrolled
            # at trace time).  Padded rows compute selu(bias) and are sliced
            # off in the wrapper (correct, slightly wasted work).
            out = agg_f32 + xres_ref[...].astype(jnp.float32)
            for layer in range(num_layers):
                w_ref = wb[2 * layer]
                b = wb[2 * layer + 1][...].astype(jnp.float32)
                out = _selu(jnp.dot(out.astype(w_ref.dtype), w_ref[...],
                                    preferred_element_type=jnp.float32) + b)
            out_ref[...] = out.astype(out_ref.dtype)

        if nk == 1:
            # Collapsed contraction: no accumulator scratch, no pl.when init.
            epilogue(partial)
        else:
            acc_ref = refs[3 + 2 * num_layers + 1]
            k = pl.program_id(1)

            @pl.when(k == 0)
            def _():
                acc_ref[...] = jnp.zeros_like(acc_ref)

            acc_ref[...] += partial

            @pl.when(k == nk - 1)
            def _():
                epilogue(acc_ref[...])

    return kernel


def input_transformer_forward(x, A_prepared, weights, biases, plan):
    """x: (N, D) f32; A_prepared: output of prepare_adjacency (padded, cast);
    weights[l]: (in_l, H) (transposed vs. PyTorch), biases[l]: (H,)."""
    N, D = x.shape
    num_layers = len(weights)
    H = weights[-1].shape[1]
    tn, tk, nk = plan["tn"], plan["tk"], plan["nk"]
    Np, Hp = plan["Np"], plan["Hp"]
    mm_dtype = plan["mm_dtype"]
    x_resident = plan["x_resident"]

    assert A_prepared.shape == (Np, Np), "A must come from prepare_adjacency"

    # x stays f32 in HBM: the residual add is exact f32; the MXU-side cast to
    # bf16 happens on the VPU inside the kernel (free filler).
    x_p = jnp.zeros((Np, D), jnp.float32).at[:N, :].set(x.astype(jnp.float32))

    # Pad / cast the (tiny) MLP parameters; zero padding keeps the math exact.
    w_p, b_p = [], []
    for layer, (w, b) in enumerate(zip(weights, biases)):
        wi, wo = w.shape
        in_p = D if layer == 0 else Hp
        w_p.append(jnp.zeros((in_p, Hp), mm_dtype)
                   .at[:wi, :wo].set(w.astype(mm_dtype)))
        b_p.append(jnp.zeros((1, Hp), jnp.float32)
                   .at[0, :wo].set(b.astype(jnp.float32)))

    sb = True  # request single-buffering for grid-invariant operands

    if nk == 1:
        grid = (Np // tn,)
        dims = ("parallel",)
        row_map = lambda i: (i, 0)            # noqa: E731
        const_map = lambda i: (0, 0)          # noqa: E731
        a_spec = pl.BlockSpec((tn, Np), row_map)        # full-row A slab
        xk_spec = _spec((Np, D), const_map, single_buffer=sb)   # resident x
        scratch = []
    else:
        grid = (Np // tn, nk)
        dims = ("parallel", "arbitrary")      # contraction axis last
        row_map = lambda i, k: (i, 0)         # noqa: E731
        const_map = lambda i, k: (0, 0)       # noqa: E731
        a_spec = pl.BlockSpec((tn, tk), lambda i, k: (i, k))
        if x_resident:
            xk_spec = _spec((Np, D), const_map, single_buffer=sb)
        else:
            xk_spec = pl.BlockSpec((tk, D), lambda i, k: (k, 0))
        scratch = [pltpu.VMEM((tn, D), jnp.float32)]

    in_specs = [
        a_spec,
        xk_spec,
        pl.BlockSpec((tn, D), row_map),       # f32 residual row tile
    ]
    args = [A_prepared, x_p, x_p]
    for wp, bp in zip(w_p, b_p):
        # Grid-invariant: constant index maps keep them VMEM-resident; single
        # buffered so they don't pay a useless second copy (matters on v7x).
        in_specs.append(_spec(wp.shape, const_map, single_buffer=sb))
        in_specs.append(_spec((1, Hp), const_map, single_buffer=sb))
        args += [wp, bp]

    kernel = _make_kernel(num_layers=num_layers, tn=tn, tk=tk, nk=nk,
                          x_resident=x_resident, mm_dtype=mm_dtype)

    out_padded = pl.pallas_call(
        kernel,
        out_shape=jax.ShapeDtypeStruct((Np, Hp), x.dtype),
        grid_spec=pltpu.PrefetchScalarGridSpec(
            num_scalar_prefetch=0,
            grid=grid,
            in_specs=in_specs,
            out_specs=pl.BlockSpec((tn, Hp), row_map),
            scratch_shapes=scratch,
        ),
        compiler_params=pltpu.CompilerParams(
            dimension_semantics=dims,
            vmem_limit_bytes=plan["vmem_limit"],
        ),
    )(*args)

    return out_padded[:N, :H]


# ---------------------------------------------------------------------------
# Parameter init + references.
# ---------------------------------------------------------------------------
def init_params(key, input_dim, hidden_dim, num_input_layers):
    """nn.Linear-style init (uniform +/- 1/sqrt(fan_in)); weights stored as
    (in_dim, out_dim), i.e. transposed vs. PyTorch."""
    weights, biases = [], []
    curr = input_dim
    for _ in range(num_input_layers):
        key, kw, kb = jax.random.split(key, 3)
        bound = 1.0 / jnp.sqrt(curr)
        weights.append(jax.random.uniform(kw, (curr, hidden_dim), jnp.float32,
                                          -bound, bound))
        biases.append(jax.random.uniform(kb, (hidden_dim,), jnp.float32,
                                         -bound, bound))
        curr = hidden_dim
    return weights, biases


def reference_forward(x, A, weights, biases):
    """Pure f32 reference, exactly the module semantics."""
    out = A @ x + x
    for w, b in zip(weights, biases):
        out = _selu(out @ w + b)
    return out


def reference_forward_bf16(x, A, weights, biases):
    """Reference mirroring the kernel's fast path: bf16 MXU inputs, f32
    accumulate, f32 residual / bias / SELU."""
    bf16 = jnp.bfloat16
    out = jnp.dot(A.astype(bf16), x.astype(bf16),
                  preferred_element_type=jnp.float32)
    out = out + x                                  # residual in exact f32
    for w, b in zip(weights, biases):
        out = jnp.dot(out.astype(bf16), w.astype(bf16),
                      preferred_element_type=jnp.float32)
        out = _selu(out + b.astype(jnp.float32))
    return out


if __name__ == "__main__":
    N, D, H = 512, 64, 96
    num_input_layers = 2

    key = jax.random.PRNGKey(0)
    kx, ka, kp = jax.random.split(key, 3)
    x = jax.random.normal(kx, (N, D), jnp.float32)
    # Synthetic binary adjacency, dense representation (torch.spmm on dense
    # A values is just a matmul).
    A = (jax.random.uniform(ka, (N, N), jnp.float32) > 0.7).astype(jnp.float32)
    weights, biases = init_params(kp, D, H, num_input_layers)

    # ---- exact-f32 path: matches the module's math ----
    plan_f32 = plan_tiles(N, D, H, num_input_layers, use_bf16=False)
    A_f32 = prepare_adjacency(A, plan_f32)              # prepared once, reused
    out_f32 = jax.block_until_ready(
        input_transformer_forward(x, A_f32, weights, biases, plan_f32))
    ref_f32 = reference_forward(x, A, weights, biases)
    assert out_f32.shape == (N, H)
    assert jnp.allclose(out_f32, ref_f32, atol=1e-3, rtol=1e-3), \
        float(jnp.max(jnp.abs(out_f32 - ref_f32)))

    # ---- fast path: bf16 MXU inputs, int8-stored adjacency (exact for 0/1),
    #      f32 accumulate / residual / bias / SELU ----
    plan_fast = plan_tiles(N, D, H, num_input_layers, use_bf16=True,
                           a_storage_dtype=jnp.int8)
    A_i8 = prepare_adjacency(A, plan_fast)              # prepared once, reused
    out_fast = jax.block_until_ready(
        input_transformer_forward(x, A_i8, weights, biases, plan_fast))
    ref_bf16 = reference_forward_bf16(x, A, weights, biases)
    assert out_fast.shape == (N, H)
    assert jnp.allclose(out_fast, ref_bf16, atol=2e-2, rtol=2e-2), \
        float(jnp.max(jnp.abs(out_fast - ref_bf16)))
    assert jnp.allclose(out_fast, ref_f32, atol=0.5, rtol=0.5)

    print("KERNEL_OK")
</pallas_src>

<mosaic_0001>
module attributes {stable_mosaic.version = 11 : i64} {
  func.func @_probe(%arg0: i32, %arg1: memref<8x128xf32, #tpu.memory_space<vmem>>, %arg2: memref<8x128xf32, #tpu.memory_space<vmem>>) attributes {dimension_semantics = [#tpu.dimension_semantics<arbitrary>], iteration_bounds = array<i64: 2>, scalar_prefetch = 0 : i64, scratch_operands = 0 : i64, tpu.core_type = #tpu.core_type<tc>, window_params = [{pipeline_mode = #tpu.pipeline_mode<synchronous>, transform_indices = @transform_0, window_bounds = array<i64: 8, 128>}, {transform_indices = @transform_1, window_bounds = array<i64: 8, 128>}]} {
    %c0 = arith.constant 0 : index
    %c0_0 = arith.constant 0 : index
    %0 = vector.load %arg1[%c0, %c0_0] : memref<8x128xf32, #tpu.memory_space<vmem>>, vector<8x128xf32>
    %cst = arith.constant 1.000000e+00 : f32
    %1 = vector.broadcast %cst : f32 to vector<8x128xf32>
    %2 = arith.addf %0, %1 : vector<8x128xf32>
    %c0_1 = arith.constant 0 : index
    %c0_2 = arith.constant 0 : index
    %3 = vector.load %arg2[%c0_1, %c0_2] : memref<8x128xf32, #tpu.memory_space<vmem>>, vector<8x128xf32>
    tpu.vector_store %arg2[%c0_1, %c0_2], %2 {strides = array<i32>} : memref<8x128xf32, #tpu.memory_space<vmem>>, vector<8x128xf32>,
    return
  }
  func.func @transform_0(%arg0: i32) -> (i32, i32) {
    %c0_i32 = arith.constant 0 : i32
    %c0_i32_0 = arith.constant 0 : i32
    %c0_i32_1 = arith.constant 0 : i32
    return %c0_i32, %c0_i32_0 : i32, i32
  }
  func.func @transform_1(%arg0: i32) -> (i32, i32) {
    %c0_i32 = arith.constant 0 : i32
    %c0_i32_0 = arith.constant 0 : i32
    return %arg0, %c0_i32 : i32, i32
  }
}

module attributes {stable_mosaic.version = 11 : i64} {
  func.func @kernel(%arg0: i32, %arg1: memref<256x512xf32, #tpu.memory_space<vmem>>, %arg2: memref<512x64xf32, #tpu.memory_space<vmem>>, %arg3: memref<256x64xf32, #tpu.memory_space<vmem>>, %arg4: memref<64x128xf32, #tpu.memory_space<vmem>>, %arg5: memref<1x128xf32, #tpu.memory_space<vmem>>, %arg6: memref<128x128xf32, #tpu.memory_space<vmem>>, %arg7: memref<1x128xf32, #tpu.memory_space<vmem>>, %arg8: memref<256x128xf32, #tpu.memory_space<vmem>>) attributes {dimension_semantics = [#tpu.dimension_semantics<parallel>], iteration_bounds = array<i64: 2>, scalar_prefetch = 0 : i64, scratch_operands = 0 : i64, tpu.core_type = #tpu.core_type<tc>, window_params = [{transform_indices = @transform_0, window_bounds = array<i64: 256, 512>}, {pipeline_mode = #tpu.pipeline_mode<synchronous>, transform_indices = @transform_1, window_bounds = array<i64: 512, 64>}, {transform_indices = @transform_2, window_bounds = array<i64: 256, 64>}, {pipeline_mode = #tpu.pipeline_mode<synchronous>, transform_indices = @transform_3, window_bounds = array<i64: 64, 128>}, {pipeline_mode = #tpu.pipeline_mode<synchronous>, transform_indices = @transform_4, window_bounds = array<i64: 1, 128>}, {pipeline_mode = #tpu.pipeline_mode<synchronous>, transform_indices = @transform_5, window_bounds = array<i64: 128, 128>}, {pipeline_mode = #tpu.pipeline_mode<synchronous>, transform_indices = @transform_6, window_bounds = array<i64: 1, 128>}, {transform_indices = @transform_7, window_bounds = array<i64: 256, 128>}]} {
    %c0 = arith.constant 0 : index
    %c0_0 = arith.constant 0 : index
    %0 = vector.load %arg2[%c0, %c0_0] : memref<512x64xf32, #tpu.memory_space<vmem>>, vector<512x64xf32>
    %c0_1 = arith.constant 0 : index
    %c0_2 = arith.constant 0 : index
    %1 = vector.load %arg1[%c0_1, %c0_2] : memref<256x512xf32, #tpu.memory_space<vmem>>, vector<256x512xf32>
    %cst = arith.constant dense<0.000000e+00> : vector<256x64xf32>
    %2 = tpu.matmul %1, %0, %cst {dimension_numbers = #tpu.dot_dimension_numbers<[1], [0], [0], [1], [0, 0, 1, 1], [], []>} : vector<256x512xf32>, vector<512x64xf32>, vector<256x64xf32> -> vector<256x64xf32>
    %c0_3 = arith.constant 0 : index
    %c0_4 = arith.constant 0 : index
    %3 = vector.load %arg3[%c0_3, %c0_4] : memref<256x64xf32, #tpu.memory_space<vmem>>, vector<256x64xf32>
    %4 = arith.addf %2, %3 : vector<256x64xf32>
    %c0_5 = arith.constant 0 : index
    %c0_6 = arith.constant 0 : index
    %5 = vector.load %arg5[%c0_5, %c0_6] : memref<1x128xf32, #tpu.memory_space<vmem>>, vector<1x128xf32>
    %c0_7 = arith.constant 0 : index
    %c0_8 = arith.constant 0 : index
    %6 = vector.load %arg4[%c0_7, %c0_8] : memref<64x128xf32, #tpu.memory_space<vmem>>, vector<64x128xf32>
    %cst_9 = arith.constant dense<0.000000e+00> : vector<256x128xf32>
    %7 = tpu.matmul %4, %6, %cst_9 {dimension_numbers = #tpu.dot_dimension_numbers<[1], [0], [0], [1], [0, 0, 1, 1], [], []>} : vector<256x64xf32>, vector<64x128xf32>, vector<256x128xf32> -> vector<256x128xf32>
    %8 = vector.broadcast %5 : vector<1x128xf32> to vector<256x128xf32>
    %9 = arith.addf %7, %8 : vector<256x128xf32>
    %cst_10 = arith.constant 0.000000e+00 : f32
    %10 = vector.broadcast %cst_10 : f32 to vector<256x128xf32>
    %11 = arith.minimumf %9, %10 : vector<256x128xf32>
    %12 = math.exp %11 : vector<256x128xf32>
    %cst_11 = arith.constant 1.000000e+00 : f32
    %13 = vector.broadcast %cst_11 : f32 to vector<256x128xf32>
    %14 = arith.subf %12, %13 : vector<256x128xf32>
    %cst_12 = arith.constant 1.67326319 : f32
    %15 = vector.broadcast %cst_12 : f32 to vector<256x128xf32>
    %16 = arith.mulf %15, %14 : vector<256x128xf32>
    %cst_13 = arith.constant 0.000000e+00 : f32
    %17 = vector.broadcast %cst_13 : f32 to vector<256x128xf32>
    %18 = arith.cmpf ogt, %9, %17 : vector<256x128xf32>
    %19 = arith.select %18, %9, %16 : vector<256x128xi1>, vector<256x128xf32>
    %cst_14 = arith.constant 1.05070102 : f32
    %20 = vector.broadcast %cst_14 : f32 to vector<256x128xf32>
    %21 = arith.mulf %20, %19 : vector<256x128xf32>
    %c0_15 = arith.constant 0 : index
    %c0_16 = arith.constant 0 : index
    %22 = vector.load %arg7[%c0_15, %c0_16] : memref<1x128xf32, #tpu.memory_space<vmem>>, vector<1x128xf32>
    %c0_17 = arith.constant 0 : index
    %c0_18 = arith.constant 0 : index
    %23 = vector.load %arg6[%c0_17, %c0_18] : memref<128x128xf32, #tpu.memory_space<vmem>>, vector<128x128xf32>
    %cst_19 = arith.constant dense<0.000000e+00> : vector<256x128xf32>
    %24 = tpu.matmul %21, %23, %cst_19 {dimension_numbers = #tpu.dot_dimension_numbers<[1], [0], [0], [1], [0, 0, 1, 1], [], []>} : vector<256x128xf32>, vector<128x128xf32>, vector<256x128xf32> -> vector<256x128xf32>
    %25 = vector.broadcast %22 : vector<1x128xf32> to vector<256x128xf32>
    %26 = arith.addf %24, %25 : vector<256x128xf32>
    %cst_20 = arith.constant 0.000000e+00 : f32
    %27 = vector.broadcast %cst_20 : f32 to vector<256x128xf32>
    %28 = arith.minimumf %26, %27 : vector<256x128xf32>
    %29 = math.exp %28 : vector<256x128xf32>
    %cst_21 = arith.constant 1.000000e+00 : f32
    %30 = vector.broadcast %cst_21 : f32 to vector<256x128xf32>
    %31 = arith.subf %29, %30 : vector<256x128xf32>
    %cst_22 = arith.constant 1.67326319 : f32
    %32 = vector.broadcast %cst_22 : f32 to vector<256x128xf32>
    %33 = arith.mulf %32, %31 : vector<256x128xf32>
    %cst_23 = arith.constant 0.000000e+00 : f32
    %34 = vector.broadcast %cst_23 : f32 to vector<256x128xf32>
    %35 = arith.cmpf ogt, %26, %34 : vector<256x128xf32>
    %36 = arith.select %35, %26, %33 : vector<256x128xi1>, vector<256x128xf32>
    %cst_24 = arith.constant 1.05070102 : f32
    %37 = vector.broadcast %cst_24 : f32 to vector<256x128xf32>
    %38 = arith.mulf %37, %36 : vector<256x128xf32>
    %c0_25 = arith.constant 0 : index
    %c0_26 = arith.constant 0 : index
    %39 = vector.load %arg8[%c0_25, %c0_26] : memref<256x128xf32, #tpu.memory_space<vmem>>, vector<256x128xf32>
    tpu.vector_store %arg8[%c0_25, %c0_26], %38 {strides = array<i32>} : memref<256x128xf32, #tpu.memory_space<vmem>>, vector<256x128xf32>,
    return
  }
  func.func @transform_0(%arg0: i32) -> (i32, i32) {
    %c0_i32 = arith.constant 0 : i32
    %c0_i32_0 = arith.constant 0 : i32
    return %arg0, %c0_i32 : i32, i32
  }
  func.func @transform_1(%arg0: i32) -> (i32, i32) {
    %c0_i32 = arith.constant 0 : i32
    %c0_i32_0 = arith.constant 0 : i32
    %c0_i32_1 = arith.constant 0 : i32
    return %c0_i32, %c0_i32_0 : i32, i32
  }
  func.func @transform_2(%arg0: i32) -> (i32, i32) {
    %c0_i32 = arith.constant 0 : i32
    %c0_i32_0 = arith.constant 0 : i32
    return %arg0, %c0_i32 : i32, i32
  }
  func.func @transform_3(%arg0: i32) -> (i32, i32) {
    %c0_i32 = arith.constant 0 : i32
    %c0_i32_0 = arith.constant 0 : i32
    %c0_i32_1 = arith.constant 0 : i32
    return %c0_i32, %c0_i32_0 : i32, i32
  }
  func.func @transform_4(%arg0: i32) -> (i32, i32) {
    %c0_i32 = arith.constant 0 : i32
    %c0_i32_0 = arith.constant 0 : i32
    %c0_i32_1 = arith.constant 0 : i32
    return %c0_i32, %c0_i32_0 : i32, i32
  }
  func.func @transform_5(%arg0: i32) -> (i32, i32) {
    %c0_i32 = arith.constant 0 : i32
    %c0_i32_0 = arith.constant 0 : i32
    %c0_i32_1 = arith.constant 0 : i32
    return %c0_i32, %c0_i32_0 : i32, i32
  }
  func.func @transform_6(%arg0: i32) -> (i32, i32) {
    %c0_i32 = arith.constant 0 : i32
    %c0_i32_0 = arith.constant 0 : i32
    %c0_i32_1 = arith.constant 0 : i32
    return %c0_i32, %c0_i32_0 : i32, i32
  }
  func.func @transform_7(%arg0: i32) -> (i32, i32) {
    %c0_i32 = arith.constant 0 : i32
    %c0_i32_0 = arith.constant 0 : i32
    return %arg0, %c0_i32 : i32, i32
  }
}

</mosaic_0001>

<llo_original>
// kernel: tpu_custom_call.1
$region0: #{tpu_custom_call.1}
  #allocation0 [shape = 'u32[]', space=smem, size = 0x4, offset = 0x4, fixed_abs, tag = 'smem constant byte address 0x4 - core index']
  #allocation1 [shape = 'u32[144,128]{1,0:T(1,128)}', space=vmem, size = 0x12000, scoped, tag = 'internal scratch']
  %s0 = inlined_call_operand.hbm [shape: f32[8,128], index: 0, kind: input, shape index: {}]
  %s1 = inlined_call_operand.hbm [shape: f32[16,128], index: 1, kind: output, shape index: {}]
  %s2 = sld [smem:[#allocation0]]
  $region41: #{tpu_custom_call.1} parent=0
    _
  %s4 = ssub.s32 1, %s2
  %s5 = scalar_select 0, %s4, %s2
  $region1: #{tpu_custom_call.1} parent=0
    #allocation2 [shape = 'u8[4096]{0}', space=vmem, size = 0x1000, scoped, tag = 'input window, operand 0, single buffered']
    #allocation3 [shape = 's32[2]{0}', space=sflag, size = 0x8, scoped, tag = 'scoped memory for tpu_custom_call.1']
    #allocation4 [shape = 's32[2]{0}', space=sflag, size = 0x8, scoped, tag = 'scoped memory for tpu_custom_call.1']
    #allocation5 [shape = 'u8[8192]{0}', space=vmem, size = 0x2000, scoped, tag = 'output window, operand 0']
    %6 = vsyncpa [#allocation3], 0
    %7 = vsyncpa [#allocation4], 0
    %s8 = scalar_lea.sflag [#allocation4], 1
    %9 = vsyncpa %s8, 0
    loop: start=0, step=1, limit=4
    $region2: #{tpu_custom_call.1} parent=1 // loop_pre_header
      _
    $region3: #{tpu_custom_call.1} parent=1 // loop_header
      %s11 = sphi 0, %s15
      %p12 = scmp.ge.s32.totalorder %s11, 4
      %s19 = sphi 0, %s19
      %s21 = sphi 0, %s19
      %s22 = sphi 0, %s21
      %s36 = sphi 0, %s22
      %s42 = sphi 0, %s44
      %s45 = sphi 0, %s42
      %s46 = sphi 0, %s45
      %s62 = sphi 0, %s46
    $region4: #{tpu_custom_call.1} parent=1 // loop_header_branch
      %14 = sbr.rel (%p12) target = $region8
    $region5: #{tpu_custom_call.1} parent=1 // loop_body
      %s16 = ssub.s32 %s11, 1
      %s17 = ssub.s32 %s11, 2
      %s18 = sadd.s32 %s11, 1
      %s20 = sadd.s32 %s19, 1
      %p23 = scmp.eq.s32.totalorder %s11, 1
      %p24 = scmp.ne.s32.totalorder %s19, %s21
      %p25 = scmp.eq.s32.totalorder %s11, 0
      %p26 = por %p24, %p25
      %p27 = scmp.ne.s32.totalorder %s19, %s21
      %p28 = scmp.eq.s32.totalorder %s16, 1
      %p29 = por %p27, %p28
      %p30 = scmp.ne.s32.totalorder %s21, %s22
      %p31 = scmp.eq.s32.totalorder %s16, 0
      %p32 = por %p30, %p31
      %p33 = scmp.ne.s32.totalorder %s21, %s22
      %p34 = scmp.eq.s32.totalorder %s17, 1
      %p35 = por %p33, %p34
      %p37 = scmp.ne.s32.totalorder %s22, %s36
      %p38 = scmp.eq.s32.totalorder %s17, 0
      %p39 = por %p37, %p38
      %s40 = ssub.s32 %s11, %s18
      %p41 = scmp.eq.s32.totalorder %s40, 0
      %s43 = sadd.s32 %s42, 1
      %s44 = scalar_select %p41, %s42, %s43
      %p47 = pneg %p41
      %p48 = scmp.eq.s32.totalorder %s11, 1
      %p49 = por %p47, %p48
      %p50 = scmp.ne.s32.totalorder %s42, %s45
      %p51 = scmp.eq.s32.totalorder %s11, 0
      %p52 = por %p50, %p51
      %p53 = scmp.ne.s32.totalorder %s42, %s45
      %p54 = scmp.eq.s32.totalorder %s16, 1
      %p55 = por %p53, %p54
      %p56 = scmp.ne.s32.totalorder %s45, %s46
      %p57 = scmp.eq.s32.totalorder %s16, 0
      %p58 = por %p56, %p57
      %p59 = scmp.ne.s32.totalorder %s45, %s46
      %p60 = scmp.eq.s32.totalorder %s17, 1
      %p61 = por %p59, %p60
      %p63 = scmp.ne.s32.totalorder %s46, %s62
      %p64 = scmp.eq.s32.totalorder %s17, 0
      %p65 = por %p63, %p64
      %p66 = scmp.le.s32.totalorder 1, %s11
      %p67 = scmp.lt.s32.totalorder %s11, 3
      %p68 = pnand %p66, %p67
      %p69 = pneg %p68
      // Predicated region
      $region9: #{tpu_custom_call.1} parent=5 // pred_check
        _
      $region10: #{tpu_custom_call.1} parent=5 // pred_check_branch
        %71 = sbr.rel (%p68) target = $region12
      $region11: #{tpu_custom_call.1} parent=5 // pred_region
        %s72 = ssub.s32 %s11, 1
        // Predicated region
        $region13: #{tpu_custom_call.1} parent=11 // pred_check
          %p73 = pneg %p32
        $region14: #{tpu_custom_call.1} parent=11 // pred_check_branch
          %75 = sbr.rel (%p73) target = $region16
        $region15: #{tpu_custom_call.1} parent=11 // pred_region
          %s77 = ssub.s32 128, 128
          %78 = vsyncadd [#allocation3], %s77
          %s80 = sshll.u32 [#allocation2], 4
          %s81 = int_to_ptr.vmem [resolvable:$true] %s80
          %83 = dma.hbm_to_vmem [thread:$0]  %s0, 128, %s81, [#allocation3]
        $region16: #{tpu_custom_call.1} parent=11 // pred_fallthru
          _
      $region12: #{tpu_custom_call.1} parent=5 // pred_fallthru
        _
      %p84 = scmp.lt.s32.totalorder %s11, 2
      // Predicated region
      $region17: #{tpu_custom_call.1} parent=5 // pred_check
        %p85 = pneg %p84
      $region18: #{tpu_custom_call.1} parent=5 // pred_check_branch
        %87 = sbr.rel (%p85) target = $region20
      $region19: #{tpu_custom_call.1} parent=5 // pred_region
        _
      $region20: #{tpu_custom_call.1} parent=5 // pred_fallthru
        _
      %p88 = scmp.le.s32.totalorder 1, %s11
      %p89 = scmp.lt.s32.totalorder %s11, 3
      %p90 = pnand %p88, %p89
      %p91 = pneg %p90
      // Predicated region
      $region21: #{tpu_custom_call.1} parent=5 // pred_check
        _
      $region22: #{tpu_custom_call.1} parent=5 // pred_check_branch
        %93 = sbr.rel (%p90) target = $region24
      $region23: #{tpu_custom_call.1} parent=5 // pred_region
        %s94 = ssub.s32 %s11, 1
        // Predicated region
        $region25: #{tpu_custom_call.1} parent=23 // pred_check
          %p95 = pneg %p32
        $region26: #{tpu_custom_call.1} parent=23 // pred_check_branch
          %97 = sbr.rel (%p95) target = $region28
        $region27: #{tpu_custom_call.1} parent=23 // pred_region
          %98 = dma.done [#allocation3], 128
        $region28: #{tpu_custom_call.1} parent=23 // pred_fallthru
          _
        %p99 = pneg %p32
        %p100 = pneg %p29
        %p101 = pneg %p58
        %p102 = pneg %p55
        %s103 = sand.u32 %s45, 1
        %s104 = scalar_lea.sflag [#allocation4], %s103
        %s105 = sand.u32 %s45, 1
        %s106 = smul.addr %s105, 8
        %s107 = scalar_lea.vmem [#allocation5], %s106
        %v108 = vld [vmem:[#allocation2] sm:$0xff]
        %v109 = vadd.f32 %v108, 1.0
        %110 = vst [vmem:[%s107] sm:$0xff] %v109
        %s111 = sand.u32 %s45, 1
        %s112 = scalar_lea.sflag [#allocation4], %s111
        %s113 = sand.u32 %s45, 1
        %s114 = smul.addr %s113, 8
        %s115 = scalar_lea.vmem [#allocation5], %s114
        // Predicated region
        $region29: #{tpu_custom_call.1} parent=23 // pred_check
          %p116 = pneg %p55
        $region30: #{tpu_custom_call.1} parent=23 // pred_check_branch
          %118 = sbr.rel (%p116) target = $region32
        $region31: #{tpu_custom_call.1} parent=23 // pred_region
          %s120 = ssub.s32 128, 128
          %121 = vsyncadd %s112, %s120
          %s122 = smul.addr %s16, 128
          %s123 = scalar_lea.hbm %s1, %s122
          %s125 = sshll.u32 %s115, 4
          %s126 = int_to_ptr.vmem [resolvable:$true] %s125
          %128 = dma.vmem_to_hbm [thread:$0]  %s126, 128, %s123, %s112
        $region32: #{tpu_custom_call.1} parent=23 // pred_fallthru
          _
      $region24: #{tpu_custom_call.1} parent=5 // pred_fallthru
        _
      %p129 = scmp.le.s32.totalorder 2, %s11
      // Predicated region
      $region33: #{tpu_custom_call.1} parent=5 // pred_check
        %p130 = pneg %p129
      $region34: #{tpu_custom_call.1} parent=5 // pred_check_branch
        %132 = sbr.rel (%p130) target = $region36
      $region35: #{tpu_custom_call.1} parent=5 // pred_region
        %s133 = ssub.s32 %s11, 2
        // Predicated region
        $region37: #{tpu_custom_call.1} parent=35 // pred_check
          %p134 = pneg %p61
        $region38: #{tpu_custom_call.1} parent=35 // pred_check_branch
          %136 = sbr.rel (%p134) target = $region40
        $region39: #{tpu_custom_call.1} parent=35 // pred_region
          %s137 = sand.u32 %s46, 1
          %s138 = scalar_lea.sflag [#allocation4], %s137
          %s139 = sand.u32 %s46, 1
          %s140 = smul.addr %s139, 8
          %s141 = scalar_lea.vmem [#allocation5], %s140
          %142 = dma.done %s138, 128
        $region40: #{tpu_custom_call.1} parent=35 // pred_fallthru
          _
      $region36: #{tpu_custom_call.1} parent=5 // pred_fallthru
        _
    $region6: #{tpu_custom_call.1} parent=1 // loop_footer
      %s15 = sadd.s32 1, %s11
    $region7: #{tpu_custom_call.1} parent=1 // loop_footer_branch
      %10 = sbr.rel target = $region3
    $region8: #{tpu_custom_call.1} parent=1 // loop_exit
      _
    %143 = vsyncpa [#allocation3], 1
    %s144 = scalar_lea.sflag [#allocation3], 1
    %145 = vsyncpa %s144, 1
    %146 = vsyncpa [#allocation4], 1
    %s147 = scalar_lea.sflag [#allocation4], 1
    %148 = vsyncpa %s147, 1

// kernel: tpu_custom_call.1
$region0: #{tpu_custom_call.1}
  #allocation0 [shape = 'u32[]', space=smem, size = 0x4, offset = 0x4, fixed_abs, tag = 'smem constant byte address 0x4 - core index']
  #allocation1 [shape = 'u32[144,128]{1,0:T(1,128)}', space=vmem, size = 0x12000, scoped, tag = 'internal scratch']
  %s0 = inlined_call_operand.hbm [shape: f32[512,512], index: 0, kind: input, shape index: {}]
  %s1 = inlined_call_operand.vmem [shape: f32[512,64], index: 1, kind: input, shape index: {}]
  %s2 = inlined_call_operand.vmem [shape: f32[512,64], index: 2, kind: input, shape index: {}]
  %s3 = inlined_call_operand.vmem [shape: f32[64,128], index: 3, kind: input, shape index: {}]
  %s4 = inlined_call_operand.vmem [shape: f32[1,128], index: 4, kind: input, shape index: {}]
  %s5 = inlined_call_operand.vmem [shape: f32[128,128], index: 5, kind: input, shape index: {}]
  %s6 = inlined_call_operand.vmem [shape: f32[1,128], index: 6, kind: input, shape index: {}]
  %s7 = inlined_call_operand.hbm [shape: f32[512,128], index: 7, kind: output, shape index: {}]
  %s8 = sld [smem:[#allocation0]]
  $region65: #{tpu_custom_call.1} parent=0
    _
  %s10 = ssub.s32 1, %s8
  %s11 = scalar_select 0, %s10, %s8
  $region1: #{tpu_custom_call.1} parent=0
    #allocation2 [shape = 'u8[1048576]{0}', space=vmem, size = 0x100000, scoped, tag = 'input window, operand 0']
    #allocation3 [shape = 's32[2]{0}', space=sflag, size = 0x8, scoped, tag = 'scoped memory for tpu_custom_call.1']
    #allocation4 [shape = 's32[2]{0}', space=sflag, size = 0x8, scoped, tag = 'scoped memory for tpu_custom_call.1']
    #allocation5 [shape = 'u8[262144]{0}', space=vmem, size = 0x40000, scoped, tag = 'output window, operand 0']
    %12 = vsyncpa [#allocation3], 0
    %s13 = scalar_lea.sflag [#allocation3], 1
    %14 = vsyncpa %s13, 0
    %15 = vsyncpa [#allocation4], 0
    %s16 = scalar_lea.sflag [#allocation4], 1
    %17 = vsyncpa %s16, 0
    loop: start=0, step=1, limit=4
    $region2: #{tpu_custom_call.1} parent=1 // loop_pre_header
      _
    $region3: #{tpu_custom_call.1} parent=1 // loop_header
      %s19 = sphi 0, %s23
      %p20 = scmp.ge.s32.totalorder %s19, 4
      %s29 = sphi 0, %s31
      %s32 = sphi 0, %s29
      %s33 = sphi 0, %s32
      %s49 = sphi 0, %s33
      %s53 = sphi 0, %s53
      %s55 = sphi 0, %s53
      %s56 = sphi 0, %s55
      %s70 = sphi 0, %s56
      %s76 = sphi 0, %s78
      %s79 = sphi 0, %s76
      %s80 = sphi 0, %s79
      %s96 = sphi 0, %s80
      %s100 = sphi 0, %s100
      %s102 = sphi 0, %s100
      %s103 = sphi 0, %s102
      %s117 = sphi 0, %s103
      %s121 = sphi 0, %s121
      %s123 = sphi 0, %s121
      %s124 = sphi 0, %s123
      %s138 = sphi 0, %s124
      %s142 = sphi 0, %s142
      %s144 = sphi 0, %s142
      %s145 = sphi 0, %s144
      %s159 = sphi 0, %s145
      %s163 = sphi 0, %s163
      %s165 = sphi 0, %s163
      %s166 = sphi 0, %s165
      %s180 = sphi 0, %s166
      %s186 = sphi 0, %s188
      %s189 = sphi 0, %s186
      %s190 = sphi 0, %s189
      %s206 = sphi 0, %s190
    $region4: #{tpu_custom_call.1} parent=1 // loop_header_branch
      %22 = sbr.rel (%p20) target = $region8
    $region5: #{tpu_custom_call.1} parent=1 // loop_body
      %s24 = ssub.s32 %s19, 1
      %s25 = ssub.s32 %s19, 2
      %s26 = sadd.s32 %s19, 1
      %s27 = ssub.s32 %s19, %s26
      %p28 = scmp.eq.s32.totalorder %s27, 0
      %s30 = sadd.s32 %s29, 1
      %s31 = scalar_select %p28, %s29, %s30
      %p34 = pneg %p28
      %p35 = scmp.eq.s32.totalorder %s19, 1
      %p36 = por %p34, %p35
      %p37 = scmp.ne.s32.totalorder %s29, %s32
      %p38 = scmp.eq.s32.totalorder %s19, 0
      %p39 = por %p37, %p38
      %p40 = scmp.ne.s32.totalorder %s29, %s32
      %p41 = scmp.eq.s32.totalorder %s24, 1
      %p42 = por %p40, %p41
      %p43 = scmp.ne.s32.totalorder %s32, %s33
      %p44 = scmp.eq.s32.totalorder %s24, 0
      %p45 = por %p43, %p44
      %p46 = scmp.ne.s32.totalorder %s32, %s33
      %p47 = scmp.eq.s32.totalorder %s25, 1
      %p48 = por %p46, %p47
      %p50 = scmp.ne.s32.totalorder %s33, %s49
      %p51 = scmp.eq.s32.totalorder %s25, 0
      %p52 = por %p50, %p51
      %s54 = sadd.s32 %s53, 1
      %p57 = scmp.eq.s32.totalorder %s19, 1
      %p58 = scmp.ne.s32.totalorder %s53, %s55
      %p59 = scmp.eq.s32.totalorder %s19, 0
      %p60 = por %p58, %p59
      %p61 = scmp.ne.s32.totalorder %s53, %s55
      %p62 = scmp.eq.s32.totalorder %s24, 1
      %p63 = por %p61, %p62
      %p64 = scmp.ne.s32.totalorder %s55, %s56
      %p65 = scmp.eq.s32.totalorder %s24, 0
      %p66 = por %p64, %p65
      %p67 = scmp.ne.s32.totalorder %s55, %s56
      %p68 = scmp.eq.s32.totalorder %s25, 1
      %p69 = por %p67, %p68
      %p71 = scmp.ne.s32.totalorder %s56, %s70
      %p72 = scmp.eq.s32.totalorder %s25, 0
      %p73 = por %p71, %p72
      %s74 = ssub.s32 %s19, %s26
      %p75 = scmp.eq.s32.totalorder %s74, 0
      %s77 = sadd.s32 %s76, 1
      %s78 = scalar_select %p75, %s76, %s77
      %p81 = pneg %p75
      %p82 = scmp.eq.s32.totalorder %s19, 1
      %p83 = por %p81, %p82
      %p84 = scmp.ne.s32.totalorder %s76, %s79
      %p85 = scmp.eq.s32.totalorder %s19, 0
      %p86 = por %p84, %p85
      %p87 = scmp.ne.s32.totalorder %s76, %s79
      %p88 = scmp.eq.s32.totalorder %s24, 1
      %p89 = por %p87, %p88
      %p90 = scmp.ne.s32.totalorder %s79, %s80
      %p91 = scmp.eq.s32.totalorder %s24, 0
      %p92 = por %p90, %p91
      %p93 = scmp.ne.s32.totalorder %s79, %s80
      %p94 = scmp.eq.s32.totalorder %s25, 1
      %p95 = por %p93, %p94
      %p97 = scmp.ne.s32.totalorder %s80, %s96
      %p98 = scmp.eq.s32.totalorder %s25, 0
      %p99 = por %p97, %p98
      %s101 = sadd.s32 %s100, 1
      %p104 = scmp.eq.s32.totalorder %s19, 1
      %p105 = scmp.ne.s32.totalorder %s100, %s102
      %p106 = scmp.eq.s32.totalorder %s19, 0
      %p107 = por %p105, %p106
      %p108 = scmp.ne.s32.totalorder %s100, %s102
      %p109 = scmp.eq.s32.totalorder %s24, 1
      %p110 = por %p108, %p109
      %p111 = scmp.ne.s32.totalorder %s102, %s103
      %p112 = scmp.eq.s32.totalorder %s24, 0
      %p113 = por %p111, %p112
      %p114 = scmp.ne.s32.totalorder %s102, %s103
      %p115 = scmp.eq.s32.totalorder %s25, 1
      %p116 = por %p114, %p115
      %p118 = scmp.ne.s32.totalorder %s103, %s117
      %p119 = scmp.eq.s32.totalorder %s25, 0
      %p120 = por %p118, %p119
      %s122 = sadd.s32 %s121, 1
      %p125 = scmp.eq.s32.totalorder %s19, 1
      %p126 = scmp.ne.s32.totalorder %s121, %s123
      %p127 = scmp.eq.s32.totalorder %s19, 0
      %p128 = por %p126, %p127
      %p129 = scmp.ne.s32.totalorder %s121, %s123
      %p130 = scmp.eq.s32.totalorder %s24, 1
      %p131 = por %p129, %p130
      %p132 = scmp.ne.s32.totalorder %s123, %s124
      %p133 = scmp.eq.s32.totalorder %s24, 0
      %p134 = por %p132, %p133
      %p135 = scmp.ne.s32.totalorder %s123, %s124
      %p136 = scmp.eq.s32.totalorder %s25, 1
      %p137 = por %p135, %p136
      %p139 = scmp.ne.s32.totalorder %s124, %s138
      %p140 = scmp.eq.s32.totalorder %s25, 0
      %p141 = por %p139, %p140
      %s143 = sadd.s32 %s142, 1
      %p146 = scmp.eq.s32.totalorder %s19, 1
      %p147 = scmp.ne.s32.totalorder %s142, %s144
      %p148 = scmp.eq.s32.totalorder %s19, 0
      %p149 = por %p147, %p148
      %p150 = scmp.ne.s32.totalorder %s142, %s144
      %p151 = scmp.eq.s32.totalorder %s24, 1
      %p152 = por %p150, %p151
      %p153 = scmp.ne.s32.totalorder %s144, %s145
      %p154 = scmp.eq.s32.totalorder %s24, 0
      %p155 = por %p153, %p154
      %p156 = scmp.ne.s32.totalorder %s144, %s145
      %p157 = scmp.eq.s32.totalorder %s25, 1
      %p158 = por %p156, %p157
      %p160 = scmp.ne.s32.totalorder %s145, %s159
      %p161 = scmp.eq.s32.totalorder %s25, 0
      %p162 = por %p160, %p161
      %s164 = sadd.s32 %s163, 1
      %p167 = scmp.eq.s32.totalorder %s19, 1
      %p168 = scmp.ne.s32.totalorder %s163, %s165
      %p169 = scmp.eq.s32.totalorder %s19, 0
      %p170 = por %p168, %p169
      %p171 = scmp.ne.s32.totalorder %s163, %s165
      %p172 = scmp.eq.s32.totalorder %s24, 1
      %p173 = por %p171, %p172
      %p174 = scmp.ne.s32.totalorder %s165, %s166
      %p175 = scmp.eq.s32.totalorder %s24, 0
      %p176 = por %p174, %p175
      %p177 = scmp.ne.s32.totalorder %s165, %s166
      %p178 = scmp.eq.s32.totalorder %s25, 1
      %p179 = por %p177, %p178
      %p181 = scmp.ne.s32.totalorder %s166, %s180
      %p182 = scmp.eq.s32.totalorder %s25, 0
      %p183 = por %p181, %p182
      %s184 = ssub.s32 %s19, %s26
      %p185 = scmp.eq.s32.totalorder %s184, 0
      %s187 = sadd.s32 %s186, 1
      %s188 = scalar_select %p185, %s186, %s187
      %p191 = pneg %p185
      %p192 = scmp.eq.s32.totalorder %s19, 1
      %p193 = por %p191, %p192
      %p194 = scmp.ne.s32.totalorder %s186, %s189
      %p195 = scmp.eq.s32.totalorder %s19, 0
      %p196 = por %p194, %p195
      %p197 = scmp.ne.s32.totalorder %s186, %s189
      %p198 = scmp.eq.s32.totalorder %s24, 1
      %p199 = por %p197, %p198
      %p200 = scmp.ne.s32.totalorder %s189, %s190
      %p201 = scmp.eq.s32.totalorder %s24, 0
      %p202 = por %p200, %p201
      %p203 = scmp.ne.s32.totalorder %s189, %s190
      %p204 = scmp.eq.s32.totalorder %s25, 1
      %p205 = por %p203, %p204
      %p207 = scmp.ne.s32.totalorder %s190, %s206
      %p208 = scmp.eq.s32.totalorder %s25, 0
      %p209 = por %p207, %p208
      %p210 = scmp.le.s32.totalorder 1, %s19
      %p211 = scmp.lt.s32.totalorder %s19, 3
      %p212 = pnand %p210, %p211
      %p213 = pneg %p212
      // Predicated region
      $region9: #{tpu_custom_call.1} parent=5 // pred_check
        _
      $region10: #{tpu_custom_call.1} parent=5 // pred_check_branch
        %215 = sbr.rel (%p212) target = $region12
      $region11: #{tpu_custom_call.1} parent=5 // pred_region
        %s216 = ssub.s32 %s19, 1
        // Predicated region
        $region13: #{tpu_custom_call.1} parent=11 // pred_check
          %p217 = pneg %p66
        $region14: #{tpu_custom_call.1} parent=11 // pred_check_branch
          %219 = sbr.rel (%p217) target = $region16
        $region15: #{tpu_custom_call.1} parent=11 // pred_region
          _
        $region16: #{tpu_custom_call.1} parent=11 // pred_fallthru
          _
        // Predicated region
        $region17: #{tpu_custom_call.1} parent=11 // pred_check
          %p220 = pneg %p113
        $region18: #{tpu_custom_call.1} parent=11 // pred_check_branch
          %222 = sbr.rel (%p220) target = $region20
        $region19: #{tpu_custom_call.1} parent=11 // pred_region
          _
        $region20: #{tpu_custom_call.1} parent=11 // pred_fallthru
          _
        // Predicated region
        $region21: #{tpu_custom_call.1} parent=11 // pred_check
          %p223 = pneg %p134
        $region22: #{tpu_custom_call.1} parent=11 // pred_check_branch
          %225 = sbr.rel (%p223) target = $region24
        $region23: #{tpu_custom_call.1} parent=11 // pred_region
          _
        $region24: #{tpu_custom_call.1} parent=11 // pred_fallthru
          _
        // Predicated region
        $region25: #{tpu_custom_call.1} parent=11 // pred_check
          %p226 = pneg %p155
        $region26: #{tpu_custom_call.1} parent=11 // pred_check_branch
          %228 = sbr.rel (%p226) target = $region28
        $region27: #{tpu_custom_call.1} parent=11 // pred_region
          _
        $region28: #{tpu_custom_call.1} parent=11 // pred_fallthru
          _
        // Predicated region
        $region29: #{tpu_custom_call.1} parent=11 // pred_check
          %p229 = pneg %p176
        $region30: #{tpu_custom_call.1} parent=11 // pred_check_branch
          %231 = sbr.rel (%p229) target = $region32
        $region31: #{tpu_custom_call.1} parent=11 // pred_region
          _
        $region32: #{tpu_custom_call.1} parent=11 // pred_fallthru
          _
      $region12: #{tpu_custom_call.1} parent=5 // pred_fallthru
        _
      %p232 = scmp.lt.s32.totalorder %s19, 2
      // Predicated region
      $region33: #{tpu_custom_call.1} parent=5 // pred_check
        %p233 = pneg %p232
      $region34: #{tpu_custom_call.1} parent=5 // pred_check_branch
        %235 = sbr.rel (%p233) target = $region36
      $region35: #{tpu_custom_call.1} parent=5 // pred_region
        // Predicated region
        $region37: #{tpu_custom_call.1} parent=35 // pred_check
          %p236 = pneg %p39
        $region38: #{tpu_custom_call.1} parent=35 // pred_check_branch
          %238 = sbr.rel (%p236) target = $region40
        $region39: #{tpu_custom_call.1} parent=35 // pred_region
          %s239 = sand.u32 %s29, 1
          %s240 = scalar_lea.sflag [#allocation3], %s239
          %s241 = sand.u32 %s29, 1
          %s242 = smul.addr %s241, 1024
          %s243 = scalar_lea.vmem [#allocation2], %s242
          %s244 = smul.u32 32, %s19
          %s246 = ssub.s32 16384, 16384
          %247 = vsyncadd %s240, %s246
          %s248 = smul.addr %s244, 4
          %s249 = smul.addr %s248, 128
          %s250 = scalar_lea.hbm %s0, %s249
          %s251 = sshll.u32 %s243, 4
          %s252 = int_to_ptr.vmem [resolvable:$true] %s251
          %257 = dma.hbm_to_vmem [thread:$0]  %s250, 16384, %s252, %s240, 512, 512, 32
        $region40: #{tpu_custom_call.1} parent=35 // pred_fallthru
          _
        // Predicated region
        $region41: #{tpu_custom_call.1} parent=35 // pred_check
          %p258 = pneg %p86
        $region42: #{tpu_custom_call.1} parent=35 // pred_check_branch
          %260 = sbr.rel (%p258) target = $region44
        $region43: #{tpu_custom_call.1} parent=35 // pred_region
          %s261 = smul.u32 32, %s19
          %p262 = scmp.lt.s32.totalorder %s261, 63
          %s263 = scalar_select %p262, %s261, 63
          %s264 = smul.addr %s263, 8
          %s265 = scalar_lea.vmem %s2, %s264
          %s266 = smul.u32 32, %s19
        $region44: #{tpu_custom_call.1} parent=35 // pred_fallthru
          _
      $region36: #{tpu_custom_call.1} parent=5 // pred_fallthru
        _
      %p267 = scmp.le.s32.totalorder 1, %s19
      %p268 = scmp.lt.s32.totalorder %s19, 3
      %p269 = pnand %p267, %p268
      %p270 = pneg %p269
      // Predicated region
      $region45: #{tpu_custom_call.1} parent=5 // pred_check
        _
      $region46: #{tpu_custom_call.1} parent=5 // pred_check_branch
        %272 = sbr.rel (%p269) target = $region48
      $region47: #{tpu_custom_call.1} parent=5 // pred_region
        %s273 = ssub.s32 %s19, 1
        %s274 = sand.u32 %s32, 1
        %s275 = scalar_lea.sflag [#allocation3], %s274
        %s276 = sand.u32 %s32, 1
        %s277 = smul.addr %s276, 1024
        %s278 = scalar_lea.vmem [#allocation2], %s277
        // Predicated region
        $region49: #{tpu_custom_call.1} parent=47 // pred_check
          %p279 = pneg %p45
        $region50: #{tpu_custom_call.1} parent=47 // pred_check_branch
          %281 = sbr.rel (%p279) target = $region52
        $region51: #{tpu_custom_call.1} parent=47 // pred_region
          %282 = dma.done %s275, 16384
        $region52: #{tpu_custom_call.1} parent=47 // pred_fallthru
          _
        %s283 = sand.u32 %s32, 1
        %s284 = scalar_lea.sflag [#allocation3], %s283
        %s285 = sand.u32 %s32, 1
        %s286 = smul.addr %s285, 1024
        %s287 = scalar_lea.vmem [#allocation2], %s286
        %p288 = pneg %p45
        %p289 = pneg %p42
        %p290 = pneg %p66
        %p291 = pneg %p63
        %s292 = smul.u32 32, %s24
        %p293 = scmp.lt.s32.totalorder %s292, 63
        %s294 = scalar_select %p293, %s292, 63
        %s295 = smul.addr %s294, 8
        %s296 = scalar_lea.vmem %s2, %s295
        %p297 = pneg %p92
        %p298 = pneg %p89
        %p299 = pneg %p113
        %p300 = pneg %p110
        %p301 = pneg %p134
        %p302 = pneg %p131
        %p303 = pneg %p155
        %p304 = pneg %p152
        %p305 = pneg %p176
        %p306 = pneg %p173
        %p307 = pneg %p202
        %p308 = pneg %p199
        %s309 = sand.u32 %s189, 1
        %s310 = scalar_lea.sflag [#allocation4], %s309
        %s311 = sand.u32 %s189, 1
        %s312 = smul.addr %s311, 256
        %s313 = scalar_lea.vmem [#allocation5], %s312
        %s314 = smul.u32 32, %s24
        %s315 = smul.u32 32, %s24
        %p316 = scmp.lt.s32.totalorder %s315, 63
        %s317 = scalar_select %p316, %s315, 63
        %s318 = smul.addr %s317, 8
        %s319 = scalar_lea.vmem %s2, %s318
        %s320 = smul.u32 32, %s24
        %s321 = smul.u32 32, %s24
        %v322 = vld [vmem:[%s1] sm:$0xff]
        %v323 = vld [vmem:[%s1 + $0x8] sm:$0xff]
        %v324 = vld [vmem:[%s1 + $0x10] sm:$0xff]
        %v325 = vld [vmem:[%s1 + $0x18] sm:$0xff]
        %v326 = vld [vmem:[%s1 + $0x20] sm:$0xff]
        %v327 = vld [vmem:[%s1 + $0x28] sm:$0xff]
        %v328 = vld [vmem:[%s1 + $0x30] sm:$0xff]
        %v329 = vld [vmem:[%s1 + $0x38] sm:$0xff]
        %v330 = vld [vmem:[%s1 + $0x40] sm:$0xff]
        %v331 = vld [vmem:[%s1 + $0x48] sm:$0xff]
        %v332 = vld [vmem:[%s1 + $0x50] sm:$0xff]
        %v333 = vld [vmem:[%s1 + $0x58] sm:$0xff]
        %v334 = vld [vmem:[%s1 + $0x60] sm:$0xff]
        %v335 = vld [vmem:[%s1 + $0x68] sm:$0xff]
        %v336 = vld [vmem:[%s1 + $0x70] sm:$0xff]
        %v337 = vld [vmem:[%s1 + $0x78] sm:$0xff]
        %v338 = vld [vmem:[%s1 + $0x80] sm:$0xff]
        %v339 = vld [vmem:[%s1 + $0x88] sm:$0xff]
        %v340 = vld [vmem:[%s1 + $0x90] sm:$0xff]
        %v341 = vld [vmem:[%s1 + $0x98] sm:$0xff]
        %v342 = vld [vmem:[%s1 + $0xa0] sm:$0xff]
        %v343 = vld [vmem:[%s1 + $0xa8] sm:$0xff]
        %v344 = vld [vmem:[%s1 + $0xb0] sm:$0xff]
        %v345 = vld [vmem:[%s1 + $0xb8] sm:$0xff]
        %v346 = vld [vmem:[%s1 + $0xc0] sm:$0xff]
        %v347 = vld [vmem:[%s1 + $0xc8] sm:$0xff]
        %v348 = vld [vmem:[%s1 + $0xd0] sm:$0xff]
        %v349 = vld [vmem:[%s1 + $0xd8] sm:$0xff]
        %v350 = vld [vmem:[%s1 + $0xe0] sm:$0xff]
        %v351 = vld [vmem:[%s1 + $0xe8] sm:$0xff]
        %v352 = vld [vmem:[%s1 + $0xf0] sm:$0xff]
        %v353 = vld [vmem:[%s1 + $0xf8] sm:$0xff]
        %v354 = vld [vmem:[%s1 + $0x100] sm:$0xff]
        %v355 = vld [vmem:[%s1 + $0x108] sm:$0xff]
        %v356 = vld [vmem:[%s1 + $0x110] sm:$0xff]
        %v357 = vld [vmem:[%s1 + $0x118] sm:$0xff]
        %v358 = vld [vmem:[%s1 + $0x120] sm:$0xff]
        %v359 = vld [vmem:[%s1 + $0x128] sm:$0xff]
        %v360 = vld [vmem:[%s1 + $0x130] sm:$0xff]
        %v361 = vld [vmem:[%s1 + $0x138] sm:$0xff]
        %v362 = vld [vmem:[%s1 + $0x140] sm:$0xff]
        %v363 = vld [vmem:[%s1 + $0x148] sm:$0xff]
        %v364 = vld [vmem:[%s1 + $0x150] sm:$0xff]
        %v365 = vld [vmem:[%s1 + $0x158] sm:$0xff]
        %v366 = vld [vmem:[%s1 + $0x160] sm:$0xff]
        %v367 = vld [vmem:[%s1 + $0x168] sm:$0xff]
        %v368 = vld [vmem:[%s1 + $0x170] sm:$0xff]
        %v369 = vld [vmem:[%s1 + $0x178] sm:$0xff]
        %v370 = vld [vmem:[%s1 + $0x180] sm:$0xff]
        %v371 = vld [vmem:[%s1 + $0x188] sm:$0xff]
        %v372 = vld [vmem:[%s1 + $0x190] sm:$0xff]
        %v373 = vld [vmem:[%s1 + $0x198] sm:$0xff]
        %v374 = vld [vmem:[%s1 + $0x1a0] sm:$0xff]
        %v375 = vld [vmem:[%s1 + $0x1a8] sm:$0xff]
        %v376 = vld [vmem:[%s1 + $0x1b0] sm:$0xff]
        %v377 = vld [vmem:[%s1 + $0x1b8] sm:$0xff]
        %v378 = vld [vmem:[%s1 + $0x1c0] sm:$0xff]
        %v379 = vld [vmem:[%s1 + $0x1c8] sm:$0xff]
        %v380 = vld [vmem:[%s1 + $0x1d0] sm:$0xff]
        %v381 = vld [vmem:[%s1 + $0x1d8] sm:$0xff]
        %v382 = vld [vmem:[%s1 + $0x1e0] sm:$0xff]
        %v383 = vld [vmem:[%s1 + $0x1e8] sm:$0xff]
        %v384 = vld [vmem:[%s1 + $0x1f0] sm:$0xff]
        %v385 = vld [vmem:[%s1 + $0x1f8] sm:$0xff]
        %v386 = vld [vmem:[%s278] sm:$0xff]
        %v387 = vld [vmem:[%s278 + $0x8] sm:$0xff]
        %v388 = vld [vmem:[%s278 + $0x10] sm:$0xff]
        %v389 = vld [vmem:[%s278 + $0x18] sm:$0xff]
        %v390 = vld [vmem:[%s278 + $0x20] sm:$0xff]
        %v391 = vld [vmem:[%s278 + $0x28] sm:$0xff]
        %v392 = vld [vmem:[%s278 + $0x30] sm:$0xff]
        %v393 = vld [vmem:[%s278 + $0x38] sm:$0xff]
        %v394 = vld [vmem:[%s278 + $0x40] sm:$0xff]
        %v395 = vld [vmem:[%s278 + $0x48] sm:$0xff]
        %v396 = vld [vmem:[%s278 + $0x50] sm:$0xff]
        %v397 = vld [vmem:[%s278 + $0x58] sm:$0xff]
        %v398 = vld [vmem:[%s278 + $0x60] sm:$0xff]
        %v399 = vld [vmem:[%s278 + $0x68] sm:$0xff]
        %v400 = vld [vmem:[%s278 + $0x70] sm:$0xff]
        %v401 = vld [vmem:[%s278 + $0x78] sm:$0xff]
        %v402 = vld [vmem:[%s278 + $0x80] sm:$0xff]
        %v403 = vld [vmem:[%s278 + $0x88] sm:$0xff]
        %v404 = vld [vmem:[%s278 + $0x90] sm:$0xff]
        %v405 = vld [vmem:[%s278 + $0x98] sm:$0xff]
        %v406 = vld [vmem:[%s278 + $0xa0] sm:$0xff]
        %v407 = vld [vmem:[%s278 + $0xa8] sm:$0xff]
        %v408 = vld [vmem:[%s278 + $0xb0] sm:$0xff]
        %v409 = vld [vmem:[%s278 + $0xb8] sm:$0xff]
        %v410 = vld [vmem:[%s278 + $0xc0] sm:$0xff]
        %v411 = vld [vmem:[%s278 + $0xc8] sm:$0xff]
        %v412 = vld [vmem:[%s278 + $0xd0] sm:$0xff]
        %v413 = vld [vmem:[%s278 + $0xd8] sm:$0xff]
        %v414 = vld [vmem:[%s278 + $0xe0] sm:$0xff]
        %v415 = vld [vmem:[%s278 + $0xe8] sm:$0xff]
        %v416 = vld [vmem:[%s278 + $0xf0] sm:$0xff]
        %v417 = vld [vmem:[%s278 + $0xf8] sm:$0xff]
        %v418 = vld [vmem:[%s278 + $0x100] sm:$0xff]
        %v419 = vld [vmem:[%s278 + $0x108] sm:$0xff]
        %v420 = vld [vmem:[%s278 + $0x110] sm:$0xff]
        %v421 = vld [vmem:[%s278 + $0x118] sm:$0xff]
        %v422 = vld [vmem:[%s278 + $0x120] sm:$0xff]
        %v423 = vld [vmem:[%s278 + $0x128] sm:$0xff]
        %v424 = vld [vmem:[%s278 + $0x130] sm:$0xff]
        %v425 = vld [vmem:[%s278 + $0x138] sm:$0xff]
        %v426 = vld [vmem:[%s278 + $0x140] sm:$0xff]
        %v427 = vld [vmem:[%s278 + $0x148] sm:$0xff]
        %v428 = vld [vmem:[%s278 + $0x150] sm:$0xff]
        %v429 = vld [vmem:[%s278 + $0x158] sm:$0xff]
        %v430 = vld [vmem:[%s278 + $0x160] sm:$0xff]
        %v431 = vld [vmem:[%s278 + $0x168] sm:$0xff]
        %v432 = vld [vmem:[%s278 + $0x170] sm:$0xff]
        %v433 = vld [vmem:[%s278 + $0x178] sm:$0xff]
        %v434 = vld [vmem:[%s278 + $0x180] sm:$0xff]
        %v435 = vld [vmem:[%s278 + $0x188] sm:$0xff]
        %v436 = vld [vmem:[%s278 + $0x190] sm:$0xff]
        %v437 = vld [vmem:[%s278 + $0x198] sm:$0xff]
        %v438 = vld [vmem:[%s278 + $0x1a0] sm:$0xff]
        %v439 = vld [vmem:[%s278 + $0x1a8] sm:$0xff]
        %v440 = vld [vmem:[%s278 + $0x1b0] sm:$0xff]
        %v441 = vld [vmem:[%s278 + $0x1b8] sm:$0xff]
        %v442 = vld [vmem:[%s278 + $0x1c0] sm:$0xff]
        %v443 = vld [vmem:[%s278 + $0x1c8] sm:$0xff]
        %v444 = vld [vmem:[%s278 + $0x1d0] sm:$0xff]
        %v445 = vld [vmem:[%s278 + $0x1d8] sm:$0xff]
        %v446 = vld [vmem:[%s278 + $0x1e0] sm:$0xff]
        %v447 = vld [vmem:[%s278 + $0x1e8] sm:$0xff]
        %v448 = vld [vmem:[%s278 + $0x1f0] sm:$0xff]
        %v449 = vld [vmem:[%s278 + $0x1f8] sm:$0xff]
        %v450 = vld [vmem:[%s278 + $0x200] sm:$0xff]
        %v451 = vld [vmem:[%s278 + $0x208] sm:$0xff]
        %v452 = vld [vmem:[%s278 + $0x210] sm:$0xff]
        %v453 = vld [vmem:[%s278 + $0x218] sm:$0xff]
        %v454 = vld [vmem:[%s278 + $0x220] sm:$0xff]
        %v455 = vld [vmem:[%s278 + $0x228] sm:$0xff]
        %v456 = vld [vmem:[%s278 + $0x230] sm:$0xff]
        %v457 = vld [vmem:[%s278 + $0x238] sm:$0xff]
        %v458 = vld [vmem:[%s278 + $0x240] sm:$0xff]
        %v459 = vld [vmem:[%s278 + $0x248] sm:$0xff]
        %v460 = vld [vmem:[%s278 + $0x250] sm:$0xff]
        %v461 = vld [vmem:[%s278 + $0x258] sm:$0xff]
        %v462 = vld [vmem:[%s278 + $0x260] sm:$0xff]
        %v463 = vld [vmem:[%s278 + $0x268] sm:$0xff]
        %v464 = vld [vmem:[%s278 + $0x270] sm:$0xff]
        %v465 = vld [vmem:[%s278 + $0x278] sm:$0xff]
        %v466 = vld [vmem:[%s278 + $0x280] sm:$0xff]
        %v467 = vld [vmem:[%s278 + $0x288] sm:$0xff]
        %v468 = vld [vmem:[%s278 + $0x290] sm:$0xff]
        %v469 = vld [vmem:[%s278 + $0x298] sm:$0xff]
        %v470 = vld [vmem:[%s278 + $0x2a0] sm:$0xff]
        %v471 = vld [vmem:[%s278 + $0x2a8] sm:$0xff]
        %v472 = vld [vmem:[%s278 + $0x2b0] sm:$0xff]
        %v473 = vld [vmem:[%s278 + $0x2b8] sm:$0xff]
        %v474 = vld [vmem:[%s278 + $0x2c0] sm:$0xff]
        %v475 = vld [vmem:[%s278 + $0x2c8] sm:$0xff]
        %v476 = vld [vmem:[%s278 + $0x2d0] sm:$0xff]
        %v477 = vld [vmem:[%s278 + $0x2d8] sm:$0xff]
        %v478 = vld [vmem:[%s278 + $0x2e0] sm:$0xff]
        %v479 = vld [vmem:[%s278 + $0x2e8] sm:$0xff]
        %v480 = vld [vmem:[%s278 + $0x2f0] sm:$0xff]
        %v481 = vld [vmem:[%s278 + $0x2f8] sm:$0xff]
        %v482 = vld [vmem:[%s278 + $0x300] sm:$0xff]
        %v483 = vld [vmem:[%s278 + $0x308] sm:$0xff]
        %v484 = vld [vmem:[%s278 + $0x310] sm:$0xff]
        %v485 = vld [vmem:[%s278 + $0x318] sm:$0xff]
        %v486 = vld [vmem:[%s278 + $0x320] sm:$0xff]
        %v487 = vld [vmem:[%s278 + $0x328] sm:$0xff]
        %v488 = vld [vmem:[%s278 + $0x330] sm:$0xff]
        %v489 = vld [vmem:[%s278 + $0x338] sm:$0xff]
        %v490 = vld [vmem:[%s278 + $0x340] sm:$0xff]
        %v491 = vld [vmem:[%s278 + $0x348] sm:$0xff]
        %v492 = vld [vmem:[%s278 + $0x350] sm:$0xff]
        %v493 = vld [vmem:[%s278 + $0x358] sm:$0xff]
        %v494 = vld [vmem:[%s278 + $0x360] sm:$0xff]
        %v495 = vld [vmem:[%s278 + $0x368] sm:$0xff]
        %v496 = vld [vmem:[%s278 + $0x370] sm:$0xff]
        %v497 = vld [vmem:[%s278 + $0x378] sm:$0xff]
        %v498 = vld [vmem:[%s278 + $0x380] sm:$0xff]
        %v499 = vld [vmem:[%s278 + $0x388] sm:$0xff]
        %v500 = vld [vmem:[%s278 + $0x390] sm:$0xff]
        %v501 = vld [vmem:[%s278 + $0x398] sm:$0xff]
        %v502 = vld [vmem:[%s278 + $0x3a0] sm:$0xff]
        %v503 = vld [vmem:[%s278 + $0x3a8] sm:$0xff]
        %v504 = vld [vmem:[%s278 + $0x3b0] sm:$0xff]
        %v505 = vld [vmem:[%s278 + $0x3b8] sm:$0xff]
        %v506 = vld [vmem:[%s278 + $0x3c0] sm:$0xff]
        %v507 = vld [vmem:[%s278 + $0x3c8] sm:$0xff]
        %v508 = vld [vmem:[%s278 + $0x3d0] sm:$0xff]
        %v509 = vld [vmem:[%s278 + $0x3d8] sm:$0xff]
        %v510 = vld [vmem:[%s278 + $0x3e0] sm:$0xff]
        %v511 = vld [vmem:[%s278 + $0x3e8] sm:$0xff]
        %v512 = vld [vmem:[%s278 + $0x3f0] sm:$0xff]
        %v513 = vld [vmem:[%s278 + $0x3f8] sm:$0xff]
        %v514 = vld [vmem:[%s319] sm:$0xff]
        %v515 = vld [vmem:[%s319 + $0x8] sm:$0xff]
        %v516 = vld [vmem:[%s319 + $0x10] sm:$0xff]
        %v517 = vld [vmem:[%s319 + $0x18] sm:$0xff]
        %v518 = vld [vmem:[%s319 + $0x20] sm:$0xff]
        %v519 = vld [vmem:[%s319 + $0x28] sm:$0xff]
        %v520 = vld [vmem:[%s319 + $0x30] sm:$0xff]
        %v521 = vld [vmem:[%s319 + $0x38] sm:$0xff]
        %v522 = vld [vmem:[%s319 + $0x40] sm:$0xff]
        %v523 = vld [vmem:[%s319 + $0x48] sm:$0xff]
        %v524 = vld [vmem:[%s319 + $0x50] sm:$0xff]
        %v525 = vld [vmem:[%s319 + $0x58] sm:$0xff]
        %v526 = vld [vmem:[%s319 + $0x60] sm:$0xff]
        %v527 = vld [vmem:[%s319 + $0x68] sm:$0xff]
        %v528 = vld [vmem:[%s319 + $0x70] sm:$0xff]
        %v529 = vld [vmem:[%s319 + $0x78] sm:$0xff]
        %v530 = vld [vmem:[%s319 + $0x80] sm:$0xff]
        %v531 = vld [vmem:[%s319 + $0x88] sm:$0xff]
        %v532 = vld [vmem:[%s319 + $0x90] sm:$0xff]
        %v533 = vld [vmem:[%s319 + $0x98] sm:$0xff]
        %v534 = vld [vmem:[%s319 + $0xa0] sm:$0xff]
        %v535 = vld [vmem:[%s319 + $0xa8] sm:$0xff]
        %v536 = vld [vmem:[%s319 + $0xb0] sm:$0xff]
        %v537 = vld [vmem:[%s319 + $0xb8] sm:$0xff]
        %v538 = vld [vmem:[%s319 + $0xc0] sm:$0xff]
        %v539 = vld [vmem:[%s319 + $0xc8] sm:$0xff]
        %v540 = vld [vmem:[%s319 + $0xd0] sm:$0xff]
        %v541 = vld [vmem:[%s319 + $0xd8] sm:$0xff]
        %v542 = vld [vmem:[%s319 + $0xe0] sm:$0xff]
        %v543 = vld [vmem:[%s319 + $0xe8] sm:$0xff]
        %v544 = vld [vmem:[%s319 + $0xf0] sm:$0xff]
        %v545 = vld [vmem:[%s319 + $0xf8] sm:$0xff]
        %546 = vmatprep.subr.mxu0 0.0
        %547 = vmatpush1.msra.mxu0 %v322
        %548 = vmatprep.subr.mxu0 0.0
        %549 = vmatpush1.msra.mxu0 %v323
        %550 = vmatprep.subr.mxu0 0.0
        %551 = vmatpush1.msra.mxu0 %v324
        %552 = vmatprep.subr.mxu0 0.0
        %553 = vmatpush1.msra.mxu0 %v325
        %554 = vmatprep.subr.mxu0 0.0
        %555 = vmatpush1.msra.mxu0 %v326
        %556 = vmatprep.subr.mxu0 0.0
        %557 = vmatpush1.msra.mxu0 %v327
        %558 = vmatprep.subr.mxu0 0.0
        %559 = vmatpush1.msra.mxu0 %v328
        %560 = vmatprep.subr.mxu0 0.0
        %561 = vmatpush1.msra.mxu0 %v329
        %562 = vmatprep.subr.mxu0 0.0
        %563 = vmatpush1.msra.mxu0 %v330
        %564 = vmatprep.subr.mxu0 0.0
        %565 = vmatpush1.msra.mxu0 %v331
        %566 = vmatprep.subr.mxu0 0.0
        %567 = vmatpush1.msra.mxu0 %v332
        %568 = vmatprep.subr.mxu0 0.0
        %569 = vmatpush1.msra.mxu0 %v333
        %570 = vmatprep.subr.mxu0 0.0
        %571 = vmatpush1.msra.mxu0 %v334
        %572 = vmatprep.subr.mxu0 0.0
        %573 = vmatpush1.msra.mxu0 %v335
        %574 = vmatprep.subr.mxu0 0.0
        %575 = vmatpush1.msra.mxu0 %v336
        %576 = vmatprep.subr.mxu0 0.0
        %577 = vmatpush1.msra.mxu0 %v337
        %578 = vmatprep.subr.mxu0 0.0
        %579 = vmatpush1.msra.mxu0 %v338
        %580 = vmatprep.subr.mxu0 0.0
        %581 = vmatpush1.msra.mxu0 %v339
        %582 = vmatprep.subr.mxu0 0.0
        %583 = vmatpush1.msra.mxu0 %v340
        %584 = vmatprep.subr.mxu0 0.0
        %585 = vmatpush1.msra.mxu0 %v341
        %586 = vmatprep.subr.mxu0 0.0
        %587 = vmatpush1.msra.mxu0 %v342
        %588 = vmatprep.subr.mxu0 0.0
        %589 = vmatpush1.msra.mxu0 %v343
        %590 = vmatprep.subr.mxu0 0.0
        %591 = vmatpush1.msra.mxu0 %v344
        %592 = vmatprep.subr.mxu0 0.0
        %593 = vmatpush1.msra.mxu0 %v345
        %594 = vmatprep.subr.mxu0 0.0
        %595 = vmatpush1.msra.mxu0 %v346
        %596 = vmatprep.subr.mxu0 0.0
        %597 = vmatpush1.msra.mxu0 %v347
        %598 = vmatprep.subr.mxu0 0.0
        %599 = vmatpush1.msra.mxu0 %v348
        %600 = vmatprep.subr.mxu0 0.0
        %601 = vmatpush1.msra.mxu0 %v349
        %602 = vmatprep.subr.mxu0 0.0
        %603 = vmatpush1.msra.mxu0 %v350
        %604 = vmatprep.subr.mxu0 0.0
        %605 = vmatpush1.msra.mxu0 %v351
        %606 = vmatprep.subr.mxu0 0.0
        %607 = vmatpush1.msra.mxu0 %v352
        %608 = vmatprep.subr.mxu0 0.0
        %609 = vmatpush1.msra.mxu0 %v353
        %610 = vmatprep.mubr.f32.mxu0 %v387
        %611 = vmatmul.mubr.f32.gmra.mrb[0].mxu0 %v386
        %v612 = vpop.f32.mrb[0].mxu0
        %v613 = vadd.f32 %v514, %v612
        %v614 = vpop.f32.mrb[0].mxu0
        %615 = vmatprep.mubr.f32.mxu0 %v391
        %616 = vmatmul.mubr.f32.gmra.mrb[0].mxu0 %v390
        %v617 = vpop.f32.mrb[0].mxu0
        %v618 = vadd.f32 %v515, %v617
        %v619 = vpop.f32.mrb[0].mxu0
        %620 = vmatprep.mubr.f32.mxu0 %v395
        %621 = vmatmul.mubr.f32.gmra.mrb[0].mxu0 %v394
        %v622 = vpop.f32.mrb[0].mxu0
        %v623 = vadd.f32 %v516, %v622
        %v624 = vpop.f32.mrb[0].mxu0
        %625 = vmatprep.mubr.f32.mxu0 %v399
        %626 = vmatmul.mubr.f32.gmra.mrb[0].mxu0 %v398
        %v627 = vpop.f32.mrb[0].mxu0
        %v628 = vadd.f32 %v517, %v627
        %v629 = vpop.f32.mrb[0].mxu0
        %630 = vmatprep.mubr.f32.mxu0 %v403
        %631 = vmatmul.mubr.f32.gmra.mrb[0].mxu0 %v402
        %v632 = vpop.f32.mrb[0].mxu0
        %v633 = vadd.f32 %v518, %v632
        %v634 = vpop.f32.mrb[0].mxu0
        %635 = vmatprep.mubr.f32.mxu0 %v407
        %636 = vmatmul.mubr.f32.gmra.mrb[0].mxu0 %v406
        %v637 = vpop.f32.mrb[0].mxu0
        %v638 = vadd.f32 %v519, %v637
        %v639 = vpop.f32.mrb[0].mxu0
        %640 = vmatprep.mubr.f32.mxu0 %v411
        %641 = vmatmul.mubr.f32.gmra.mrb[0].mxu0 %v410
        %v642 = vpop.f32.mrb[0].mxu0
        %v643 = vadd.f32 %v520, %v642
        %v644 = vpop.f32.mrb[0].mxu0
        %645 = vmatprep.mubr.f32.mxu0 %v415
        %646 = vmatmul.mubr.f32.gmra.mrb[0].mxu0 %v414
        %v647 = vpop.f32.mrb[0].mxu0
        %v648 = vadd.f32 %v521, %v647
        %v649 = vpop.f32.mrb[0].mxu0
        %650 = vmatprep.mubr.f32.mxu0 %v419
        %651 = vmatmul.mubr.f32.gmra.mrb[0].mxu0 %v418
        %v652 = vpop.f32.mrb[0].mxu0
        %v653 = vadd.f32 %v522, %v652
        %v654 = vpop.f32.mrb[0].mxu0
        %655 = vmatprep.mubr.f32.mxu0 %v423
        %656 = vmatmul.mubr.f32.gmra.mrb[0].mxu0 %v422
        %v657 = vpop.f32.mrb[0].mxu0
        %v658 = vadd.f32 %v523, %v657
        %v659 = vpop.f32.mrb[0].mxu0
        %660 = vmatprep.mubr.f32.mxu0 %v427
        %661 = vmatmul.mubr.f32.gmra.mrb[0].mxu0 %v426
        %v662 = vpop.f32.mrb[0].mxu0
        %v663 = vadd.f32 %v524, %v662
        %v664 = vpop.f32.mrb[0].mxu0
        %665 = vmatprep.mubr.f32.mxu0 %v431
        %666 = vmatmul.mubr.f32.gmra.mrb[0].mxu0 %v430
        %v667 = vpop.f32.mrb[0].mxu0
        %v668 = vadd.f32 %v525, %v667
        %v669 = vpop.f32.mrb[0].mxu0
        %670 = vmatprep.mubr.f32.mxu0 %v435
        %671 = vmatmul.mubr.f32.gmra.mrb[0].mxu0 %v434
        %v672 = vpop.f32.mrb[0].mxu0
        %v673 = vadd.f32 %v526, %v672
        %v674 = vpop.f32.mrb[0].mxu0
        %675 = vmatprep.mubr.f32.mxu0 %v439
        %676 = vmatmul.mubr.f32.gmra.mrb[0].mxu0 %v438
        %v677 = vpop.f32.mrb[0].mxu0
        %v678 = vadd.f32 %v527, %v677
        %v679 = vpop.f32.mrb[0].mxu0
        %680 = vmatprep.mubr.f32.mxu0 %v443
        %681 = vmatmul.mubr.f32.gmra.mrb[0].mxu0 %v442
        %v682 = vpop.f32.mrb[0].mxu0
        %v683 = vadd.f32 %v528, %v682
        %v684 = vpop.f32.mrb[0].mxu0
        %685 = vmatprep.mubr.f32.mxu0 %v447
        %686 = vmatmul.mubr.f32.gmra.mrb[0].mxu0 %v446
        %v687 = vpop.f32.mrb[0].mxu0
        %v688 = vadd.f32 %v529, %v687
        %v689 = vpop.f32.mrb[0].mxu0
        %690 = vmatprep.mubr.f32.mxu0 %v451
        %691 = vmatmul.mubr.f32.gmra.mrb[0].mxu0 %v450
        %v692 = vpop.f32.mrb[0].mxu0
        %v693 = vadd.f32 %v530, %v692
        %v694 = vpop.f32.mrb[0].mxu0
        %695 = vmatprep.mubr.f32.mxu0 %v455
        %696 = vmatmul.mubr.f32.gmra.mrb[0].mxu0 %v454
        %v697 = vpop.f32.mrb[0].mxu0
        %v698 = vadd.f32 %v531, %v697
        %v699 = vpop.f32.mrb[0].mxu0
        %700 = vmatprep.mubr.f32.mxu0 %v459
        %701 = vmatmul.mubr.f32.gmra.mrb[0].mxu0 %v458
        %v702 = vpop.f32.mrb[0].mxu0
        %v703 = vadd.f32 %v532, %v702
        %v704 = vpop.f32.mrb[0].mxu0
        %705 = vmatprep.mubr.f32.mxu0 %v463
        %706 = vmatmul.mubr.f32.gmra.mrb[0].mxu0 %v462
        %v707 = vpop.f32.mrb[0].mxu0
        %v708 = vadd.f32 %v533, %v707
        %v709 = vpop.f32.mrb[0].mxu0
        %710 = vmatprep.mubr.f32.mxu0 %v467
        %711 = vmatmul.mubr.f32.gmra.mrb[0].mxu0 %v466
        %v712 = vpop.f32.mrb[0].mxu0
        %v713 = vadd.f32 %v534, %v712
        %v714 = vpop.f32.mrb[0].mxu0
        %715 = vmatprep.mubr.f32.mxu0 %v471
        %716 = vmatmul.mubr.f32.gmra.mrb[0].mxu0 %v470
        %v717 = vpop.f32.mrb[0].mxu0
        %v718 = vadd.f32 %v535, %v717
        %v719 = vpop.f32.mrb[0].mxu0
        %720 = vmatprep.mubr.f32.mxu0 %v475
        %721 = vmatmul.mubr.f32.gmra.mrb[0].mxu0 %v474
        %v722 = vpop.f32.mrb[0].mxu0
        %v723 = vadd.f32 %v536, %v722
        %v724 = vpop.f32.mrb[0].mxu0
        %725 = vmatprep.mubr.f32.mxu0 %v479
        %726 = vmatmul.mubr.f32.gmra.mrb[0].mxu0 %v478
        %v727 = vpop.f32.mrb[0].mxu0
        %v728 = vadd.f32 %v537, %v727
        %v729 = vpop.f32.mrb[0].mxu0
        %730 = vmatprep.mubr.f32.mxu0 %v483
        %731 = vmatmul.mubr.f32.gmra.mrb[0].mxu0 %v482
        %v732 = vpop.f32.mrb[0].mxu0
        %v733 = vadd.f32 %v538, %v732
        %v734 = vpop.f32.mrb[0].mxu0
        %735 = vmatprep.mubr.f32.mxu0 %v487
        %736 = vmatmul.mubr.f32.gmra.mrb[0].mxu0 %v486
        %v737 = vpop.f32.mrb[0].mxu0
        %v738 = vadd.f32 %v539, %v737
        %v739 = vpop.f32.mrb[0].mxu0
        %740 = vmatprep.mubr.f32.mxu0 %v491
        %741 = vmatmul.mubr.f32.gmra.mrb[0].mxu0 %v490
        %v742 = vpop.f32.mrb[0].mxu0
        %v743 = vadd.f32 %v540, %v742
        %v744 = vpop.f32.mrb[0].mxu0
        %745 = vmatprep.mubr.f32.mxu0 %v495
        %746 = vmatmul.mubr.f32.gmra.mrb[0].mxu0 %v494
        %v747 = vpop.f32.mrb[0].mxu0
        %v748 = vadd.f32 %v541, %v747
        %v749 = vpop.f32.mrb[0].mxu0
        %750 = vmatprep.mubr.f32.mxu0 %v499
        %751 = vmatmul.mubr.f32.gmra.mrb[0].mxu0 %v498
        %v752 = vpop.f32.mrb[0].mxu0
        %v753 = vadd.f32 %v542, %v752
        %v754 = vpop.f32.mrb[0].mxu0
        %755 = vmatprep.mubr.f32.mxu0 %v503
        %756 = vmatmul.mubr.f32.gmra.mrb[0].mxu0 %v502
        %v757 = vpop.f32.mrb[0].mxu0
        %v758 = vadd.f32 %v543, %v757
        %v759 = vpop.f32.mrb[0].mxu0
        %760 = vmatprep.mubr.f32.mxu0 %v507
        %761 = vmatmul.mubr.f32.gmra.mrb[0].mxu0 %v506
        %v762 = vpop.f32.mrb[0].mxu0
        %v763 = vadd.f32 %v544, %v762
        %v764 = vpop.f32.mrb[0].mxu0
        %765 = vmatprep.mubr.f32.mxu0 %v511
        %766 = vmatmul.mubr.f32.gmra.mrb[0].mxu0 %v510
        %v767 = vpop.f32.mrb[0].mxu0
        %v768 = vadd.f32 %v545, %v767
        %v769 = vpop.f32.mrb[0].mxu0
        %770 = vdwg.mxu0
        %771 = vmatprep.subr.mxu0 0.0
        %772 = vmatpush1.msra.mxu0 %v354
        %773 = vmatprep.subr.mxu0 0.0
        %774 = vmatpush1.msra.mxu0 %v355
        %775 = vmatprep.subr.mxu0 0.0
        %776 = vmatpush1.msra.mxu0 %v356
        %777 = vmatprep.subr.mxu0 0.0
        %778 = vmatpush1.msra.mxu0 %v357
        %779 = vmatprep.subr.mxu0 0.0
        %780 = vmatpush1.msra.mxu0 %v358
        %781 = vmatprep.subr.mxu0 0.0
        %782 = vmatpush1.msra.mxu0 %v359
        %783 = vmatprep.subr.mxu0 0.0
        %784 = vmatpush1.msra.mxu0 %v360
        %785 = vmatprep.subr.mxu0 0.0
        %786 = vmatpush1.msra.mxu0 %v361
        %787 = vmatprep.subr.mxu0 0.0
        %788 = vmatpush1.msra.mxu0 %v362
        %789 = vmatprep.subr.mxu0 0.0
        %790 = vmatpush1.msra.mxu0 %v363
        %791 = vmatprep.subr.mxu0 0.0
        %792 = vmatpush1.msra.mxu0 %v364
        %793 = vmatprep.subr.mxu0 0.0
        %794 = vmatpush1.msra.mxu0 %v365
        %795 = vmatprep.subr.mxu0 0.0
        %796 = vmatpush1.msra.mxu0 %v366
        %797 = vmatprep.subr.mxu0 0.0
        %798 = vmatpush1.msra.mxu0 %v367
        %799 = vmatprep.subr.mxu0 0.0
        %800 = vmatpush1.msra.mxu0 %v368
        %801 = vmatprep.subr.mxu0 0.0
        %802 = vmatpush1.msra.mxu0 %v369
        %803 = vmatprep.subr.mxu0 0.0
        %804 = vmatpush1.msra.mxu0 %v370
        %805 = vmatprep.subr.mxu0 0.0
        %806 = vmatpush1.msra.mxu0 %v371
        %807 = vmatprep.subr.mxu0 0.0
        %808 = vmatpush1.msra.mxu0 %v372
        %809 = vmatprep.subr.mxu0 0.0
        %810 = vmatpush1.msra.mxu0 %v373
        %811 = vmatprep.subr.mxu0 0.0
        %812 = vmatpush1.msra.mxu0 %v374
        %813 = vmatprep.subr.mxu0 0.0
        %814 = vmatpush1.msra.mxu0 %v375
        %815 = vmatprep.subr.mxu0 0.0
        %816 = vmatpush1.msra.mxu0 %v376
        %817 = vmatprep.subr.mxu0 0.0
        %818 = vmatpush1.msra.mxu0 %v377
        %819 = vmatprep.subr.mxu0 0.0
        %820 = vmatpush1.msra.mxu0 %v378
        %821 = vmatprep.subr.mxu0 0.0
        %822 = vmatpush1.msra.mxu0 %v379
        %823 = vmatprep.subr.mxu0 0.0
        %824 = vmatpush1.msra.mxu0 %v380
        %825 = vmatprep.subr.mxu0 0.0
        %826 = vmatpush1.msra.mxu0 %v381
        %827 = vmatprep.subr.mxu0 0.0
        %828 = vmatpush1.msra.mxu0 %v382
        %829 = vmatprep.subr.mxu0 0.0
        %830 = vmatpush1.msra.mxu0 %v383
        %831 = vmatprep.subr.mxu0 0.0
        %832 = vmatpush1.msra.mxu0 %v384
        %833 = vmatprep.subr.mxu0 0.0
        %834 = vmatpush1.msra.mxu0 %v385
        %835 = vmatprep.mubr.f32.mxu0 %v389
        %836 = vmatmul.mubr.f32.gmra.mrb[0].mxu0 %v388
        %v837 = vpop.f32.mrb[0].mxu0
        %v838 = vadd.f32 %v613, %v837
        %v839 = vpop.f32.mrb[0].mxu0
        %840 = vmatprep.mubr.f32.mxu0 %v393
        %841 = vmatmul.mubr.f32.gmra.mrb[0].mxu0 %v392
        %v842 = vpop.f32.mrb[0].mxu0
        %v843 = vadd.f32 %v618, %v842
        %v844 = vpop.f32.mrb[0].mxu0
        %845 = vmatprep.mubr.f32.mxu0 %v397
        %846 = vmatmul.mubr.f32.gmra.mrb[0].mxu0 %v396
        %v847 = vpop.f32.mrb[0].mxu0
        %v848 = vadd.f32 %v623, %v847
        %v849 = vpop.f32.mrb[0].mxu0
        %850 = vmatprep.mubr.f32.mxu0 %v401
        %851 = vmatmul.mubr.f32.gmra.mrb[0].mxu0 %v400
        %v852 = vpop.f32.mrb[0].mxu0
        %v853 = vadd.f32 %v628, %v852
        %v854 = vpop.f32.mrb[0].mxu0
        %855 = vmatprep.mubr.f32.mxu0 %v405
        %856 = vmatmul.mubr.f32.gmra.mrb[0].mxu0 %v404
        %v857 = vpop.f32.mrb[0].mxu0
        %v858 = vadd.f32 %v633, %v857
        %v859 = vpop.f32.mrb[0].mxu0
        %860 = vmatprep.mubr.f32.mxu0 %v409
        %861 = vmatmul.mubr.f32.gmra.mrb[0].mxu0 %v408
        %v862 = vpop.f32.mrb[0].mxu0
        %v863 = vadd.f32 %v638, %v862
        %v864 = vpop.f32.mrb[0].mxu0
        %865 = vmatprep.mubr.f32.mxu0 %v413
        %866 = vmatmul.mubr.f32.gmra.mrb[0].mxu0 %v412
        %v867 = vpop.f32.mrb[0].mxu0
        %v868 = vadd.f32 %v643, %v867
        %v869 = vpop.f32.mrb[0].mxu0
        %870 = vmatprep.mubr.f32.mxu0 %v417
        %871 = vmatmul.mubr.f32.gmra.mrb[0].mxu0 %v416
        %v872 = vpop.f32.mrb[0].mxu0
        %v873 = vadd.f32 %v648, %v872
        %v874 = vpop.f32.mrb[0].mxu0
        %875 = vmatprep.mubr.f32.mxu0 %v421
        %876 = vmatmul.mubr.f32.gmra.mrb[0].mxu0 %v420
        %v877 = vpop.f32.mrb[0].mxu0
        %v878 = vadd.f32 %v653, %v877
        %v879 = vpop.f32.mrb[0].mxu0
        %880 = vmatprep.mubr.f32.mxu0 %v425
        %881 = vmatmul.mubr.f32.gmra.mrb[0].mxu0 %v424
        %v882 = vpop.f32.mrb[0].mxu0
        %v883 = vadd.f32 %v658, %v882
        %v884 = vpop.f32.mrb[0].mxu0
        %885 = vmatprep.mubr.f32.mxu0 %v429
        %886 = vmatmul.mubr.f32.gmra.mrb[0].mxu0 %v428
        %v887 = vpop.f32.mrb[0].mxu0
        %v888 = vadd.f32 %v663, %v887
        %v889 = vpop.f32.mrb[0].mxu0
        %890 = vmatprep.mubr.f32.mxu0 %v433
        %891 = vmatmul.mubr.f32.gmra.mrb[0].mxu0 %v432
        %v892 = vpop.f32.mrb[0].mxu0
        %v893 = vadd.f32 %v668, %v892
        %v894 = vpop.f32.mrb[0].mxu0
        %895 = vmatprep.mubr.f32.mxu0 %v437
        %896 = vmatmul.mubr.f32.gmra.mrb[0].mxu0 %v436
        %v897 = vpop.f32.mrb[0].mxu0
        %v898 = vadd.f32 %v673, %v897
        %v899 = vpop.f32.mrb[0].mxu0
        %900 = vmatprep.mubr.f32.mxu0 %v441
        %901 = vmatmul.mubr.f32.gmra.mrb[0].mxu0 %v440
        %v902 = vpop.f32.mrb[0].mxu0
        %v903 = vadd.f32 %v678, %v902
        %v904 = vpop.f32.mrb[0].mxu0
        %905 = vmatprep.mubr.f32.mxu0 %v445
        %906 = vmatmul.mubr.f32.gmra.mrb[0].mxu0 %v444
        %v907 = vpop.f32.mrb[0].mxu0
        %v908 = vadd.f32 %v683, %v907
        %v909 = vpop.f32.mrb[0].mxu0
        %910 = vmatprep.mubr.f32.mxu0 %v449
        %911 = vmatmul.mubr.f32.gmra.mrb[0].mxu0 %v448
        %v912 = vpop.f32.mrb[0].mxu0
        %v913 = vadd.f32 %v688, %v912
        %v914 = vpop.f32.mrb[0].mxu0
        %915 = vmatprep.mubr.f32.mxu0 %v453
        %916 = vmatmul.mubr.f32.gmra.mrb[0].mxu0 %v452
        %v917 = vpop.f32.mrb[0].mxu0
        %v918 = vadd.f32 %v693, %v917
        %v919 = vpop.f32.mrb[0].mxu0
        %920 = vmatprep.mubr.f32.mxu0 %v457
        %921 = vmatmul.mubr.f32.gmra.mrb[0].mxu0 %v456
        %v922 = vpop.f32.mrb[0].mxu0
        %v923 = vadd.f32 %v698, %v922
        %v924 = vpop.f32.mrb[0].mxu0
        %925 = vmatprep.mubr.f32.mxu0 %v461
        %926 = vmatmul.mubr.f32.gmra.mrb[0].mxu0 %v460
        %v927 = vpop.f32.mrb[0].mxu0
        %v928 = vadd.f32 %v703, %v927
        %v929 = vpop.f32.mrb[0].mxu0
        %930 = vmatprep.mubr.f32.mxu0 %v465
        %931 = vmatmul.mubr.f32.gmra.mrb[0].mxu0 %v464
        %v932 = vpop.f32.mrb[0].mxu0
        %v933 = vadd.f32 %v708, %v932
        %v934 = vpop.f32.mrb[0].mxu0
        %935 = vmatprep.mubr.f32.mxu0 %v469
        %936 = vmatmul.mubr.f32.gmra.mrb[0].mxu0 %v468
        %v937 = vpop.f32.mrb[0].mxu0
        %v938 = vadd.f32 %v713, %v937
        %v939 = vpop.f32.mrb[0].mxu0
        %940 = vmatprep.mubr.f32.mxu0 %v473
        %941 = vmatmul.mubr.f32.gmra.mrb[0].mxu0 %v472
        %v942 = vpop.f32.mrb[0].mxu0
        %v943 = vadd.f32 %v718, %v942
        %v944 = vpop.f32.mrb[0].mxu0
        %945 = vmatprep.mubr.f32.mxu0 %v477
        %946 = vmatmul.mubr.f32.gmra.mrb[0].mxu0 %v476
        %v947 = vpop.f32.mrb[0].mxu0
        %v948 = vadd.f32 %v723, %v947
        %v949 = vpop.f32.mrb[0].mxu0
        %950 = vmatprep.mubr.f32.mxu0 %v481
        %951 = vmatmul.mubr.f32.gmra.mrb[0].mxu0 %v480
        %v952 = vpop.f32.mrb[0].mxu0
        %v953 = vadd.f32 %v728, %v952
        %v954 = vpop.f32.mrb[0].mxu0
        %955 = vmatprep.mubr.f32.mxu0 %v485
        %956 = vmatmul.mubr.f32.gmra.mrb[0].mxu0 %v484
        %v957 = vpop.f32.mrb[0].mxu0
        %v958 = vadd.f32 %v733, %v957
        %v959 = vpop.f32.mrb[0].mxu0
        %960 = vmatprep.mubr.f32.mxu0 %v489
        %961 = vmatmul.mubr.f32.gmra.mrb[0].mxu0 %v488
        %v962 = vpop.f32.mrb[0].mxu0
        %v963 = vadd.f32 %v738, %v962
        %v964 = vpop.f32.mrb[0].mxu0
        %965 = vmatprep.mubr.f32.mxu0 %v493
        %966 = vmatmul.mubr.f32.gmra.mrb[0].mxu0 %v492
        %v967 = vpop.f32.mrb[0].mxu0
        %v968 = vadd.f32 %v743, %v967
        %v969 = vpop.f32.mrb[0].mxu0
        %970 = vmatprep.mubr.f32.mxu0 %v497
        %971 = vmatmul.mubr.f32.gmra.mrb[0].mxu0 %v496
        %v972 = vpop.f32.mrb[0].mxu0
        %v973 = vadd.f32 %v748, %v972
        %v974 = vpop.f32.mrb[0].mxu0
        %975 = vmatprep.mubr.f32.mxu0 %v501
        %976 = vmatmul.mubr.f32.gmra.mrb[0].mxu0 %v500
        %v977 = vpop.f32.mrb[0].mxu0
        %v978 = vadd.f32 %v753, %v977
        %v979 = vpop.f32.mrb[0].mxu0
        %980 = vmatprep.mubr.f32.mxu0 %v505
        %981 = vmatmul.mubr.f32.gmra.mrb[0].mxu0 %v504
        %v982 = vpop.f32.mrb[0].mxu0
        %v983 = vadd.f32 %v758, %v982
        %v984 = vpop.f32.mrb[0].mxu0
        %985 = vmatprep.mubr.f32.mxu0 %v509
        %986 = vmatmul.mubr.f32.gmra.mrb[0].mxu0 %v508
        %v987 = vpop.f32.mrb[0].mxu0
        %v988 = vadd.f32 %v763, %v987
        %v989 = vpop.f32.mrb[0].mxu0
        %990 = vmatprep.mubr.f32.mxu0 %v513
        %991 = vmatmul.mubr.f32.gmra.mrb[0].mxu0 %v512
        %v992 = vpop.f32.mrb[0].mxu0
        %v993 = vadd.f32 %v768, %v992
        %v994 = vpop.f32.mrb[0].mxu0
        %995 = vdwg.mxu0
        %v996 = vld [vmem:[%s4] sm:$0x1]
        %v997 = vld [vmem:[%s3] sm:$0xff]
        %v998 = vld [vmem:[%s3 + $0x8] sm:$0xff]
        %v999 = vld [vmem:[%s3 + $0x10] sm:$0xff]
        %v1000 = vld [vmem:[%s3 + $0x18] sm:$0xff]
        %v1001 = vld [vmem:[%s3 + $0x20] sm:$0xff]
        %v1002 = vld [vmem:[%s3 + $0x28] sm:$0xff]
        %v1003 = vld [vmem:[%s3 + $0x30] sm:$0xff]
        %v1004 = vld [vmem:[%s3 + $0x38] sm:$0xff]
        %v1006 = vlaneseq
        %v1007 = vshrl.u32 %v1006, 7
        %v1008 = vsub.s32 0, %v1007
        %v1009 = vrot.slane %v996, %v1008
        %vm1011 = vcmask 523264
        %v1013 = vsel %vm1011, %v838, 0
        %v1016 = vsel %vm1011, %v843, 0
        %v1019 = vsel %vm1011, %v848, 0
        %v1022 = vsel %vm1011, %v853, 0
        %v1025 = vsel %vm1011, %v858, 0
        %v1028 = vsel %vm1011, %v863, 0
        %v1031 = vsel %vm1011, %v868, 0
        %v1034 = vsel %vm1011, %v873, 0
        %v1037 = vsel %vm1011, %v878, 0
        %v1040 = vsel %vm1011, %v883, 0
        %v1043 = vsel %vm1011, %v888, 0
        %v1046 = vsel %vm1011, %v893, 0
        %v1049 = vsel %vm1011, %v898, 0
        %v1052 = vsel %vm1011, %v903, 0
        %v1055 = vsel %vm1011, %v908, 0
        %v1058 = vsel %vm1011, %v913, 0
        %v1061 = vsel %vm1011, %v918, 0
        %v1064 = vsel %vm1011, %v923, 0
        %v1067 = vsel %vm1011, %v928, 0
        %v1070 = vsel %vm1011, %v933, 0
        %v1073 = vsel %vm1011, %v938, 0
        %v1076 = vsel %vm1011, %v943, 0
        %v1079 = vsel %vm1011, %v948, 0
        %v1082 = vsel %vm1011, %v953, 0
        %v1085 = vsel %vm1011, %v958, 0
        %v1088 = vsel %vm1011, %v963, 0
        %v1091 = vsel %vm1011, %v968, 0
        %v1094 = vsel %vm1011, %v973, 0
        %v1097 = vsel %vm1011, %v978, 0
        %v1100 = vsel %vm1011, %v983, 0
        %v1103 = vsel %vm1011, %v988, 0
        %v1106 = vsel %vm1011, %v993, 0
        %1108 = vmatprep.subr.mxu0 0.0
        %1109 = vmatpush1.msra.mxu0 %v997
        %1110 = vmatprep.subr.mxu0 0.0
        %1111 = vmatpush1.msra.mxu0 %v998
        %1112 = vmatprep.subr.mxu0 0.0
        %1113 = vmatpush1.msra.mxu0 %v999
        %1114 = vmatprep.subr.mxu0 0.0
        %1115 = vmatpush1.msra.mxu0 %v1000
        %1116 = vmatprep.subr.mxu0 0.0
        %1117 = vmatpush1.msra.mxu0 %v1001
        %1118 = vmatprep.subr.mxu0 0.0
        %1119 = vmatpush1.msra.mxu0 %v1002
        %1120 = vmatprep.subr.mxu0 0.0
        %1121 = vmatpush1.msra.mxu0 %v1003
        %1122 = vmatprep.subr.mxu0 0.0
        %1123 = vmatpush1.msra.mxu0 %v1004
        %1124 = vmatprep.subr.mxu0 0.0
        %1125 = vmatpush1.msra.mxu0 0.0
        %1126 = vmatprep.subr.mxu0 0.0
        %1127 = vmatpush1.msra.mxu0 0.0
        %1128 = vmatprep.subr.mxu0 0.0
        %1129 = vmatpush1.msra.mxu0 0.0
        %1130 = vmatprep.subr.mxu0 0.0
        %1131 = vmatpush1.msra.mxu0 0.0
        %1132 = vmatprep.subr.mxu0 0.0
        %1133 = vmatpush1.msra.mxu0 0.0
        %1134 = vmatprep.subr.mxu0 0.0
        %1135 = vmatpush1.msra.mxu0 0.0
        %1136 = vmatprep.subr.mxu0 0.0
        %1137 = vmatpush1.msra.mxu0 0.0
        %1138 = vmatprep.subr.mxu0 0.0
        %1139 = vmatpush1.msra.mxu0 0.0
        %1140 = vmatprep.subr.mxu0 0.0
        %1141 = vmatpush1.msra.mxu0 0.0
        %1142 = vmatprep.subr.mxu0 0.0
        %1143 = vmatpush1.msra.mxu0 0.0
        %1144 = vmatprep.subr.mxu0 0.0
        %1145 = vmatpush1.msra.mxu0 0.0
        %1146 = vmatprep.subr.mxu0 0.0
        %1147 = vmatpush1.msra.mxu0 0.0
        %1148 = vmatprep.subr.mxu0 0.0
        %1149 = vmatpush1.msra.mxu0 0.0
        %1150 = vmatprep.subr.mxu0 0.0
        %1151 = vmatpush1.msra.mxu0 0.0
        %1152 = vmatprep.subr.mxu0 0.0
        %1153 = vmatpush1.msra.mxu0 0.0
        %1154 = vmatprep.subr.mxu0 0.0
        %1155 = vmatpush1.msra.mxu0 0.0
        %1156 = vmatprep.subr.mxu0 0.0
        %1157 = vmatpush1.msra.mxu0 0.0
        %1158 = vmatprep.subr.mxu0 0.0
        %1159 = vmatpush1.msra.mxu0 0.0
        %1160 = vmatprep.subr.mxu0 0.0
        %1161 = vmatpush1.msra.mxu0 0.0
        %1162 = vmatprep.subr.mxu0 0.0
        %1163 = vmatpush1.msra.mxu0 0.0
        %1164 = vmatprep.subr.mxu0 0.0
        %1165 = vmatpush1.msra.mxu0 0.0
        %1166 = vmatprep.subr.mxu0 0.0
        %1167 = vmatpush1.msra.mxu0 0.0
        %1168 = vmatprep.subr.mxu0 0.0
        %1169 = vmatpush1.msra.mxu0 0.0
        %1170 = vmatprep.subr.mxu0 0.0
        %1171 = vmatpush1.msra.mxu0 0.0
        %1172 = vmatprep.mubr.f32.mxu0 0.0
        %1173 = vmatmul.mubr.f32.gmra.mrb[0].mxu0 %v1013
        %v1174 = vpop.f32.mrb[0].mxu0
        %v1175 = vadd.f32 %v1009, %v1174
        %v1176 = vpop.f32.mrb[0].mxu0
        %1177 = vmatprep.mubr.f32.mxu0 0.0
        %1178 = vmatmul.mubr.f32.gmra.mrb[0].mxu0 %v1016
        %v1179 = vpop.f32.mrb[0].mxu0
        %v1180 = vadd.f32 %v1009, %v1179
        %v1181 = vpop.f32.mrb[0].mxu0
        %1182 = vmatprep.mubr.f32.mxu0 0.0
        %1183 = vmatmul.mubr.f32.gmra.mrb[0].mxu0 %v1019
        %v1184 = vpop.f32.mrb[0].mxu0
        %v1185 = vadd.f32 %v1009, %v1184
        %v1186 = vpop.f32.mrb[0].mxu0
        %1187 = vmatprep.mubr.f32.mxu0 0.0
        %1188 = vmatmul.mubr.f32.gmra.mrb[0].mxu0 %v1022
        %v1189 = vpop.f32.mrb[0].mxu0
        %v1190 = vadd.f32 %v1009, %v1189
        %v1191 = vpop.f32.mrb[0].mxu0
        %1192 = vmatprep.mubr.f32.mxu0 0.0
        %1193 = vmatmul.mubr.f32.gmra.mrb[0].mxu0 %v1025
        %v1194 = vpop.f32.mrb[0].mxu0
        %v1195 = vadd.f32 %v1009, %v1194
        %v1196 = vpop.f32.mrb[0].mxu0
        %1197 = vmatprep.mubr.f32.mxu0 0.0
        %1198 = vmatmul.mubr.f32.gmra.mrb[0].mxu0 %v1028
        %v1199 = vpop.f32.mrb[0].mxu0
        %v1200 = vadd.f32 %v1009, %v1199
        %v1201 = vpop.f32.mrb[0].mxu0
        %1202 = vmatprep.mubr.f32.mxu0 0.0
        %1203 = vmatmul.mubr.f32.gmra.mrb[0].mxu0 %v1031
        %v1204 = vpop.f32.mrb[0].mxu0
        %v1205 = vadd.f32 %v1009, %v1204
        %v1206 = vpop.f32.mrb[0].mxu0
        %1207 = vmatprep.mubr.f32.mxu0 0.0
        %1208 = vmatmul.mubr.f32.gmra.mrb[0].mxu0 %v1034
        %v1209 = vpop.f32.mrb[0].mxu0
        %v1210 = vadd.f32 %v1009, %v1209
        %v1211 = vpop.f32.mrb[0].mxu0
        %1212 = vmatprep.mubr.f32.mxu0 0.0
        %1213 = vmatmul.mubr.f32.gmra.mrb[0].mxu0 %v1037
        %v1214 = vpop.f32.mrb[0].mxu0
        %v1215 = vadd.f32 %v1009, %v1214
        %v1216 = vpop.f32.mrb[0].mxu0
        %1217 = vmatprep.mubr.f32.mxu0 0.0
        %1218 = vmatmul.mubr.f32.gmra.mrb[0].mxu0 %v1040
        %v1219 = vpop.f32.mrb[0].mxu0
        %v1220 = vadd.f32 %v1009, %v1219
        %v1221 = vpop.f32.mrb[0].mxu0
        %1222 = vmatprep.mubr.f32.mxu0 0.0
        %1223 = vmatmul.mubr.f32.gmra.mrb[0].mxu0 %v1043
        %v1224 = vpop.f32.mrb[0].mxu0
        %v1225 = vadd.f32 %v1009, %v1224
        %v1226 = vpop.f32.mrb[0].mxu0
        %1227 = vmatprep.mubr.f32.mxu0 0.0
        %1228 = vmatmul.mubr.f32.gmra.mrb[0].mxu0 %v1046
        %v1229 = vpop.f32.mrb[0].mxu0
        %v1230 = vadd.f32 %v1009, %v1229
        %v1231 = vpop.f32.mrb[0].mxu0
        %1232 = vmatprep.mubr.f32.mxu0 0.0
        %1233 = vmatmul.mubr.f32.gmra.mrb[0].mxu0 %v1049
        %v1234 = vpop.f32.mrb[0].mxu0
        %v1235 = vadd.f32 %v1009, %v1234
        %v1236 = vpop.f32.mrb[0].mxu0
        %1237 = vmatprep.mubr.f32.mxu0 0.0
        %1238 = vmatmul.mubr.f32.gmra.mrb[0].mxu0 %v1052
        %v1239 = vpop.f32.mrb[0].mxu0
        %v1240 = vadd.f32 %v1009, %v1239
        %v1241 = vpop.f32.mrb[0].mxu0
        %1242 = vmatprep.mubr.f32.mxu0 0.0
        %1243 = vmatmul.mubr.f32.gmra.mrb[0].mxu0 %v1055
        %v1244 = vpop.f32.mrb[0].mxu0
        %v1245 = vadd.f32 %v1009, %v1244
        %v1246 = vpop.f32.mrb[0].mxu0
        %1247 = vmatprep.mubr.f32.mxu0 0.0
        %1248 = vmatmul.mubr.f32.gmra.mrb[0].mxu0 %v1058
        %v1249 = vpop.f32.mrb[0].mxu0
        %v1250 = vadd.f32 %v1009, %v1249
        %v1251 = vpop.f32.mrb[0].mxu0
        %1252 = vmatprep.mubr.f32.mxu0 0.0
        %1253 = vmatmul.mubr.f32.gmra.mrb[0].mxu0 %v1061
        %v1254 = vpop.f32.mrb[0].mxu0
        %v1255 = vadd.f32 %v1009, %v1254
        %v1256 = vpop.f32.mrb[0].mxu0
        %1257 = vmatprep.mubr.f32.mxu0 0.0
        %1258 = vmatmul.mubr.f32.gmra.mrb[0].mxu0 %v1064
        %v1259 = vpop.f32.mrb[0].mxu0
        %v1260 = vadd.f32 %v1009, %v1259
        %v1261 = vpop.f32.mrb[0].mxu0
        %1262 = vmatprep.mubr.f32.mxu0 0.0
        %1263 = vmatmul.mubr.f32.gmra.mrb[0].mxu0 %v1067
        %v1264 = vpop.f32.mrb[0].mxu0
        %v1265 = vadd.f32 %v1009, %v1264
        %v1266 = vpop.f32.mrb[0].mxu0
        %1267 = vmatprep.mubr.f32.mxu0 0.0
        %1268 = vmatmul.mubr.f32.gmra.mrb[0].mxu0 %v1070
        %v1269 = vpop.f32.mrb[0].mxu0
        %v1270 = vadd.f32 %v1009, %v1269
        %v1271 = vpop.f32.mrb[0].mxu0
        %1272 = vmatprep.mubr.f32.mxu0 0.0
        %1273 = vmatmul.mubr.f32.gmra.mrb[0].mxu0 %v1073
        %v1274 = vpop.f32.mrb[0].mxu0
        %v1275 = vadd.f32 %v1009, %v1274
        %v1276 = vpop.f32.mrb[0].mxu0
        %1277 = vmatprep.mubr.f32.mxu0 0.0
        %1278 = vmatmul.mubr.f32.gmra.mrb[0].mxu0 %v1076
        %v1279 = vpop.f32.mrb[0].mxu0
        %v1280 = vadd.f32 %v1009, %v1279
        %v1281 = vpop.f32.mrb[0].mxu0
        %1282 = vmatprep.mubr.f32.mxu0 0.0
        %1283 = vmatmul.mubr.f32.gmra.mrb[0].mxu0 %v1079
        %v1284 = vpop.f32.mrb[0].mxu0
        %v1285 = vadd.f32 %v1009, %v1284
        %v1286 = vpop.f32.mrb[0].mxu0
        %1287 = vmatprep.mubr.f32.mxu0 0.0
        %1288 = vmatmul.mubr.f32.gmra.mrb[0].mxu0 %v1082
        %v1289 = vpop.f32.mrb[0].mxu0
        %v1290 = vadd.f32 %v1009, %v1289
        %v1291 = vpop.f32.mrb[0].mxu0
        %1292 = vmatprep.mubr.f32.mxu0 0.0
        %1293 = vmatmul.mubr.f32.gmra.mrb[0].mxu0 %v1085
        %v1294 = vpop.f32.mrb[0].mxu0
        %v1295 = vadd.f32 %v1009, %v1294
        %v1296 = vpop.f32.mrb[0].mxu0
        %1297 = vmatprep.mubr.f32.mxu0 0.0
        %1298 = vmatmul.mubr.f32.gmra.mrb[0].mxu0 %v1088
        %v1299 = vpop.f32.mrb[0].mxu0
        %v1300 = vadd.f32 %v1009, %v1299
        %v1301 = vpop.f32.mrb[0].mxu0
        %1302 = vmatprep.mubr.f32.mxu0 0.0
        %1303 = vmatmul.mubr.f32.gmra.mrb[0].mxu0 %v1091
        %v1304 = vpop.f32.mrb[0].mxu0
        %v1305 = vadd.f32 %v1009, %v1304
        %v1306 = vpop.f32.mrb[0].mxu0
        %1307 = vmatprep.mubr.f32.mxu0 0.0
        %1308 = vmatmul.mubr.f32.gmra.mrb[0].mxu0 %v1094
        %v1309 = vpop.f32.mrb[0].mxu0
        %v1310 = vadd.f32 %v1009, %v1309
        %v1311 = vpop.f32.mrb[0].mxu0
        %1312 = vmatprep.mubr.f32.mxu0 0.0
        %1313 = vmatmul.mubr.f32.gmra.mrb[0].mxu0 %v1097
        %v1314 = vpop.f32.mrb[0].mxu0
        %v1315 = vadd.f32 %v1009, %v1314
        %v1316 = vpop.f32.mrb[0].mxu0
        %1317 = vmatprep.mubr.f32.mxu0 0.0
        %1318 = vmatmul.mubr.f32.gmra.mrb[0].mxu0 %v1100
        %v1319 = vpop.f32.mrb[0].mxu0
        %v1320 = vadd.f32 %v1009, %v1319
        %v1321 = vpop.f32.mrb[0].mxu0
        %1322 = vmatprep.mubr.f32.mxu0 0.0
        %1323 = vmatmul.mubr.f32.gmra.mrb[0].mxu0 %v1103
        %v1324 = vpop.f32.mrb[0].mxu0
        %v1325 = vadd.f32 %v1009, %v1324
        %v1326 = vpop.f32.mrb[0].mxu0
        %1327 = vmatprep.mubr.f32.mxu0 0.0
        %1328 = vmatmul.mubr.f32.gmra.mrb[0].mxu0 %v1106
        %v1329 = vpop.f32.mrb[0].mxu0
        %v1330 = vadd.f32 %v1009, %v1329
        %v1331 = vpop.f32.mrb[0].mxu0
        %1332 = vdwg.mxu0
        %v1333 = vmin.f32 %v1175, 0.0
        %v1334 = vmin.f32 %v1180, 0.0
        %v1335 = vmin.f32 %v1185, 0.0
        %v1336 = vmin.f32 %v1190, 0.0
        %v1337 = vmin.f32 %v1195, 0.0
        %v1338 = vmin.f32 %v1200, 0.0
        %v1339 = vmin.f32 %v1205, 0.0
        %v1340 = vmin.f32 %v1210, 0.0
        %v1341 = vmin.f32 %v1215, 0.0
        %v1342 = vmin.f32 %v1220, 0.0
        %v1343 = vmin.f32 %v1225, 0.0
        %v1344 = vmin.f32 %v1230, 0.0
        %v1345 = vmin.f32 %v1235, 0.0
        %v1346 = vmin.f32 %v1240, 0.0
        %v1347 = vmin.f32 %v1245, 0.0
        %v1348 = vmin.f32 %v1250, 0.0
        %v1349 = vmin.f32 %v1255, 0.0
        %v1350 = vmin.f32 %v1260, 0.0
        %v1351 = vmin.f32 %v1265, 0.0
        %v1352 = vmin.f32 %v1270, 0.0
        %v1353 = vmin.f32 %v1275, 0.0
        %v1354 = vmin.f32 %v1280, 0.0
        %v1355 = vmin.f32 %v1285, 0.0
        %v1356 = vmin.f32 %v1290, 0.0
        %v1357 = vmin.f32 %v1295, 0.0
        %v1358 = vmin.f32 %v1300, 0.0
        %v1359 = vmin.f32 %v1305, 0.0
        %v1360 = vmin.f32 %v1310, 0.0
        %v1361 = vmin.f32 %v1315, 0.0
        %v1362 = vmin.f32 %v1320, 0.0
        %v1363 = vmin.f32 %v1325, 0.0
        %v1364 = vmin.f32 %v1330, 0.0
        %v1365 = vmul.f32 %v1333, 1.442695
        %v1366 = vpow.pop %v1365
        %v1367 = vmul.f32 %v1334, 1.442695
        %v1368 = vpow.pop %v1367
        %v1369 = vmul.f32 %v1335, 1.442695
        %v1370 = vpow.pop %v1369
        %v1371 = vmul.f32 %v1336, 1.442695
        %v1372 = vpow.pop %v1371
        %v1373 = vmul.f32 %v1337, 1.442695
        %v1374 = vpow.pop %v1373
        %v1375 = vmul.f32 %v1338, 1.442695
        %v1376 = vpow.pop %v1375
        %v1377 = vmul.f32 %v1339, 1.442695
        %v1378 = vpow.pop %v1377
        %v1379 = vmul.f32 %v1340, 1.442695
        %v1380 = vpow.pop %v1379
        %v1381 = vmul.f32 %v1341, 1.442695
        %v1382 = vpow.pop %v1381
        %v1383 = vmul.f32 %v1342, 1.442695
        %v1384 = vpow.pop %v1383
        %v1385 = vmul.f32 %v1343, 1.442695
        %v1386 = vpow.pop %v1385
        %v1387 = vmul.f32 %v1344, 1.442695
        %v1388 = vpow.pop %v1387
        %v1389 = vmul.f32 %v1345, 1.442695
        %v1390 = vpow.pop %v1389
        %v1391 = vmul.f32 %v1346, 1.442695
        %v1392 = vpow.pop %v1391
        %v1393 = vmul.f32 %v1347, 1.442695
        %v1394 = vpow.pop %v1393
        %v1395 = vmul.f32 %v1348, 1.442695
        %v1396 = vpow.pop %v1395
        %v1397 = vmul.f32 %v1349, 1.442695
        %v1398 = vpow.pop %v1397
        %v1399 = vmul.f32 %v1350, 1.442695
        %v1400 = vpow.pop %v1399
        %v1401 = vmul.f32 %v1351, 1.442695
        %v1402 = vpow.pop %v1401
        %v1403 = vmul.f32 %v1352, 1.442695
        %v1404 = vpow.pop %v1403
        %v1405 = vmul.f32 %v1353, 1.442695
        %v1406 = vpow.pop %v1405
        %v1407 = vmul.f32 %v1354, 1.442695
        %v1408 = vpow.pop %v1407
        %v1409 = vmul.f32 %v1355, 1.442695
        %v1410 = vpow.pop %v1409
        %v1411 = vmul.f32 %v1356, 1.442695
        %v1412 = vpow.pop %v1411
        %v1413 = vmul.f32 %v1357, 1.442695
        %v1414 = vpow.pop %v1413
        %v1415 = vmul.f32 %v1358, 1.442695
        %v1416 = vpow.pop %v1415
        %v1417 = vmul.f32 %v1359, 1.442695
        %v1418 = vpow.pop %v1417
        %v1419 = vmul.f32 %v1360, 1.442695
        %v1420 = vpow.pop %v1419
        %v1421 = vmul.f32 %v1361, 1.442695
        %v1422 = vpow.pop %v1421
        %v1423 = vmul.f32 %v1362, 1.442695
        %v1424 = vpow.pop %v1423
        %v1425 = vmul.f32 %v1363, 1.442695
        %v1426 = vpow.pop %v1425
        %v1427 = vmul.f32 %v1364, 1.442695
        %v1428 = vpow.pop %v1427
        %v1429 = vsub.f32 %v1366, 1.0
        %v1430 = vsub.f32 %v1368, 1.0
        %v1431 = vsub.f32 %v1370, 1.0
        %v1432 = vsub.f32 %v1372, 1.0
        %v1433 = vsub.f32 %v1374, 1.0
        %v1434 = vsub.f32 %v1376, 1.0
        %v1435 = vsub.f32 %v1378, 1.0
        %v1436 = vsub.f32 %v1380, 1.0
        %v1437 = vsub.f32 %v1382, 1.0
        %v1438 = vsub.f32 %v1384, 1.0
        %v1439 = vsub.f32 %v1386, 1.0
        %v1440 = vsub.f32 %v1388, 1.0
        %v1441 = vsub.f32 %v1390, 1.0
        %v1442 = vsub.f32 %v1392, 1.0
        %v1443 = vsub.f32 %v1394, 1.0
        %v1444 = vsub.f32 %v1396, 1.0
        %v1445 = vsub.f32 %v1398, 1.0
        %v1446 = vsub.f32 %v1400, 1.0
        %v1447 = vsub.f32 %v1402, 1.0
        %v1448 = vsub.f32 %v1404, 1.0
        %v1449 = vsub.f32 %v1406, 1.0
        %v1450 = vsub.f32 %v1408, 1.0
        %v1451 = vsub.f32 %v1410, 1.0
        %v1452 = vsub.f32 %v1412, 1.0
        %v1453 = vsub.f32 %v1414, 1.0
        %v1454 = vsub.f32 %v1416, 1.0
        %v1455 = vsub.f32 %v1418, 1.0
        %v1456 = vsub.f32 %v1420, 1.0
        %v1457 = vsub.f32 %v1422, 1.0
        %v1458 = vsub.f32 %v1424, 1.0
        %v1459 = vsub.f32 %v1426, 1.0
        %v1460 = vsub.f32 %v1428, 1.0
        %v1461 = vmul.f32 %v1429, 1.6732632
        %v1462 = vmul.f32 %v1430, 1.6732632
        %v1463 = vmul.f32 %v1431, 1.6732632
        %v1464 = vmul.f32 %v1432, 1.6732632
        %v1465 = vmul.f32 %v1433, 1.6732632
        %v1466 = vmul.f32 %v1434, 1.6732632
        %v1467 = vmul.f32 %v1435, 1.6732632
        %v1468 = vmul.f32 %v1436, 1.6732632
        %v1469 = vmul.f32 %v1437, 1.6732632
        %v1470 = vmul.f32 %v1438, 1.6732632
        %v1471 = vmul.f32 %v1439, 1.6732632
        %v1472 = vmul.f32 %v1440, 1.6732632
        %v1473 = vmul.f32 %v1441, 1.6732632
        %v1474 = vmul.f32 %v1442, 1.6732632
        %v1475 = vmul.f32 %v1443, 1.6732632
        %v1476 = vmul.f32 %v1444, 1.6732632
        %v1477 = vmul.f32 %v1445, 1.6732632
        %v1478 = vmul.f32 %v1446, 1.6732632
        %v1479 = vmul.f32 %v1447, 1.6732632
        %v1480 = vmul.f32 %v1448, 1.6732632
        %v1481 = vmul.f32 %v1449, 1.6732632
        %v1482 = vmul.f32 %v1450, 1.6732632
        %v1483 = vmul.f32 %v1451, 1.6732632
        %v1484 = vmul.f32 %v1452, 1.6732632
        %v1485 = vmul.f32 %v1453, 1.6732632
        %v1486 = vmul.f32 %v1454, 1.6732632
        %v1487 = vmul.f32 %v1455, 1.6732632
        %v1488 = vmul.f32 %v1456, 1.6732632
        %v1489 = vmul.f32 %v1457, 1.6732632
        %v1490 = vmul.f32 %v1458, 1.6732632
        %v1491 = vmul.f32 %v1459, 1.6732632
        %v1492 = vmul.f32 %v1460, 1.6732632
        %vm1493 = vcmp.gt.f32.partialorder %v1175, 0.0
        %vm1494 = vcmp.gt.f32.partialorder %v1180, 0.0
        %vm1495 = vcmp.gt.f32.partialorder %v1185, 0.0
        %vm1496 = vcmp.gt.f32.partialorder %v1190, 0.0
        %vm1497 = vcmp.gt.f32.partialorder %v1195, 0.0
        %vm1498 = vcmp.gt.f32.partialorder %v1200, 0.0
        %vm1499 = vcmp.gt.f32.partialorder %v1205, 0.0
        %vm1500 = vcmp.gt.f32.partialorder %v1210, 0.0
        %vm1501 = vcmp.gt.f32.partialorder %v1215, 0.0
        %vm1502 = vcmp.gt.f32.partialorder %v1220, 0.0
        %vm1503 = vcmp.gt.f32.partialorder %v1225, 0.0
        %vm1504 = vcmp.gt.f32.partialorder %v1230, 0.0
        %vm1505 = vcmp.gt.f32.partialorder %v1235, 0.0
        %vm1506 = vcmp.gt.f32.partialorder %v1240, 0.0
        %vm1507 = vcmp.gt.f32.partialorder %v1245, 0.0
        %vm1508 = vcmp.gt.f32.partialorder %v1250, 0.0
        %vm1509 = vcmp.gt.f32.partialorder %v1255, 0.0
        %vm1510 = vcmp.gt.f32.partialorder %v1260, 0.0
        %vm1511 = vcmp.gt.f32.partialorder %v1265, 0.0
        %vm1512 = vcmp.gt.f32.partialorder %v1270, 0.0
        %vm1513 = vcmp.gt.f32.partialorder %v1275, 0.0
        %vm1514 = vcmp.gt.f32.partialorder %v1280, 0.0
        %vm1515 = vcmp.gt.f32.partialorder %v1285, 0.0
        %vm1516 = vcmp.gt.f32.partialorder %v1290, 0.0
        %vm1517 = vcmp.gt.f32.partialorder %v1295, 0.0
        %vm1518 = vcmp.gt.f32.partialorder %v1300, 0.0
        %vm1519 = vcmp.gt.f32.partialorder %v1305, 0.0
        %vm1520 = vcmp.gt.f32.partialorder %v1310, 0.0
        %vm1521 = vcmp.gt.f32.partialorder %v1315, 0.0
        %vm1522 = vcmp.gt.f32.partialorder %v1320, 0.0
        %vm1523 = vcmp.gt.f32.partialorder %v1325, 0.0
        %vm1524 = vcmp.gt.f32.partialorder %v1330, 0.0
        %v1525 = vsel %vm1493, %v1175, %v1461
        %v1526 = vsel %vm1494, %v1180, %v1462
        %v1527 = vsel %vm1495, %v1185, %v1463
        %v1528 = vsel %vm1496, %v1190, %v1464
        %v1529 = vsel %vm1497, %v1195, %v1465
        %v1530 = vsel %vm1498, %v1200, %v1466
        %v1531 = vsel %vm1499, %v1205, %v1467
        %v1532 = vsel %vm1500, %v1210, %v1468
        %v1533 = vsel %vm1501, %v1215, %v1469
        %v1534 = vsel %vm1502, %v1220, %v1470
        %v1535 = vsel %vm1503, %v1225, %v1471
        %v1536 = vsel %vm1504, %v1230, %v1472
        %v1537 = vsel %vm1505, %v1235, %v1473
        %v1538 = vsel %vm1506, %v1240, %v1474
        %v1539 = vsel %vm1507, %v1245, %v1475
        %v1540 = vsel %vm1508, %v1250, %v1476
        %v1541 = vsel %vm1509, %v1255, %v1477
        %v1542 = vsel %vm1510, %v1260, %v1478
        %v1543 = vsel %vm1511, %v1265, %v1479
        %v1544 = vsel %vm1512, %v1270, %v1480
        %v1545 = vsel %vm1513, %v1275, %v1481
        %v1546 = vsel %vm1514, %v1280, %v1482
        %v1547 = vsel %vm1515, %v1285, %v1483
        %v1548 = vsel %vm1516, %v1290, %v1484
        %v1549 = vsel %vm1517, %v1295, %v1485
        %v1550 = vsel %vm1518, %v1300, %v1486
        %v1551 = vsel %vm1519, %v1305, %v1487
        %v1552 = vsel %vm1520, %v1310, %v1488
        %v1553 = vsel %vm1521, %v1315, %v1489
        %v1554 = vsel %vm1522, %v1320, %v1490
        %v1555 = vsel %vm1523, %v1325, %v1491
        %v1556 = vsel %vm1524, %v1330, %v1492
        %v1557 = vmul.f32 %v1525, 1.050701
        %v1558 = vmul.f32 %v1526, 1.050701
        %v1559 = vmul.f32 %v1527, 1.050701
        %v1560 = vmul.f32 %v1528, 1.050701
        %v1561 = vmul.f32 %v1529, 1.050701
        %v1562 = vmul.f32 %v1530, 1.050701
        %v1563 = vmul.f32 %v1531, 1.050701
        %v1564 = vmul.f32 %v1532, 1.050701
        %v1565 = vmul.f32 %v1533, 1.050701
        %v1566 = vmul.f32 %v1534, 1.050701
        %v1567 = vmul.f32 %v1535, 1.050701
        %v1568 = vmul.f32 %v1536, 1.050701
        %v1569 = vmul.f32 %v1537, 1.050701
        %v1570 = vmul.f32 %v1538, 1.050701
        %v1571 = vmul.f32 %v1539, 1.050701
        %v1572 = vmul.f32 %v1540, 1.050701
        %v1573 = vmul.f32 %v1541, 1.050701
        %v1574 = vmul.f32 %v1542, 1.050701
        %v1575 = vmul.f32 %v1543, 1.050701
        %v1576 = vmul.f32 %v1544, 1.050701
        %v1577 = vmul.f32 %v1545, 1.050701
        %v1578 = vmul.f32 %v1546, 1.050701
        %v1579 = vmul.f32 %v1547, 1.050701
        %v1580 = vmul.f32 %v1548, 1.050701
        %v1581 = vmul.f32 %v1549, 1.050701
        %v1582 = vmul.f32 %v1550, 1.050701
        %v1583 = vmul.f32 %v1551, 1.050701
        %v1584 = vmul.f32 %v1552, 1.050701
        %v1585 = vmul.f32 %v1553, 1.050701
        %v1586 = vmul.f32 %v1554, 1.050701
        %v1587 = vmul.f32 %v1555, 1.050701
        %v1588 = vmul.f32 %v1556, 1.050701
        %v1589 = vld [vmem:[%s6] sm:$0x1]
        %v1590 = vld [vmem:[%s5] sm:$0xff]
        %v1591 = vld [vmem:[%s5 + $0x8] sm:$0xff]
        %v1592 = vld [vmem:[%s5 + $0x10] sm:$0xff]
        %v1593 = vld [vmem:[%s5 + $0x18] sm:$0xff]
        %v1594 = vld [vmem:[%s5 + $0x20] sm:$0xff]
        %v1595 = vld [vmem:[%s5 + $0x28] sm:$0xff]
        %v1596 = vld [vmem:[%s5 + $0x30] sm:$0xff]
        %v1597 = vld [vmem:[%s5 + $0x38] sm:$0xff]
        %v1598 = vld [vmem:[%s5 + $0x40] sm:$0xff]
        %v1599 = vld [vmem:[%s5 + $0x48] sm:$0xff]
        %v1600 = vld [vmem:[%s5 + $0x50] sm:$0xff]
        %v1601 = vld [vmem:[%s5 + $0x58] sm:$0xff]
        %v1602 = vld [vmem:[%s5 + $0x60] sm:$0xff]
        %v1603 = vld [vmem:[%s5 + $0x68] sm:$0xff]
        %v1604 = vld [vmem:[%s5 + $0x70] sm:$0xff]
        %v1605 = vld [vmem:[%s5 + $0x78] sm:$0xff]
        %v1607 = vlaneseq
        %v1608 = vshrl.u32 %v1607, 7
        %v1609 = vsub.s32 0, %v1608
        %v1610 = vrot.slane %v1589, %v1609
        %1612 = vmatprep.subr.mxu0 0.0
        %1613 = vmatpush1.msra.mxu0 %v1590
        %1614 = vmatprep.subr.mxu0 0.0
        %1615 = vmatpush1.msra.mxu0 %v1591
        %1616 = vmatprep.subr.mxu0 0.0
        %1617 = vmatpush1.msra.mxu0 %v1592
        %1618 = vmatprep.subr.mxu0 0.0
        %1619 = vmatpush1.msra.mxu0 %v1593
        %1620 = vmatprep.subr.mxu0 0.0
        %1621 = vmatpush1.msra.mxu0 %v1594
        %1622 = vmatprep.subr.mxu0 0.0
        %1623 = vmatpush1.msra.mxu0 %v1595
        %1624 = vmatprep.subr.mxu0 0.0
        %1625 = vmatpush1.msra.mxu0 %v1596
        %1626 = vmatprep.subr.mxu0 0.0
        %1627 = vmatpush1.msra.mxu0 %v1597
        %1628 = vmatprep.subr.mxu0 0.0
        %1629 = vmatpush1.msra.mxu0 %v1598
        %1630 = vmatprep.subr.mxu0 0.0
        %1631 = vmatpush1.msra.mxu0 %v1599
        %1632 = vmatprep.subr.mxu0 0.0
        %1633 = vmatpush1.msra.mxu0 %v1600
        %1634 = vmatprep.subr.mxu0 0.0
        %1635 = vmatpush1.msra.mxu0 %v1601
        %1636 = vmatprep.subr.mxu0 0.0
        %1637 = vmatpush1.msra.mxu0 %v1602
        %1638 = vmatprep.subr.mxu0 0.0
        %1639 = vmatpush1.msra.mxu0 %v1603
        %1640 = vmatprep.subr.mxu0 0.0
        %1641 = vmatpush1.msra.mxu0 %v1604
        %1642 = vmatprep.subr.mxu0 0.0
        %1643 = vmatpush1.msra.mxu0 %v1605
        %1644 = vmatprep.subr.mxu0 0.0
        %1645 = vmatpush1.msra.mxu0 0.0
        %1646 = vmatprep.subr.mxu0 0.0
        %1647 = vmatpush1.msra.mxu0 0.0
        %1648 = vmatprep.subr.mxu0 0.0
        %1649 = vmatpush1.msra.mxu0 0.0
        %1650 = vmatprep.subr.mxu0 0.0
        %1651 = vmatpush1.msra.mxu0 0.0
        %1652 = vmatprep.subr.mxu0 0.0
        %1653 = vmatpush1.msra.mxu0 0.0
        %1654 = vmatprep.subr.mxu0 0.0
        %1655 = vmatpush1.msra.mxu0 0.0
        %1656 = vmatprep.subr.mxu0 0.0
        %1657 = vmatpush1.msra.mxu0 0.0
        %1658 = vmatprep.subr.mxu0 0.0
        %1659 = vmatpush1.msra.mxu0 0.0
        %1660 = vmatprep.subr.mxu0 0.0
        %1661 = vmatpush1.msra.mxu0 0.0
        %1662 = vmatprep.subr.mxu0 0.0
        %1663 = vmatpush1.msra.mxu0 0.0
        %1664 = vmatprep.subr.mxu0 0.0
        %1665 = vmatpush1.msra.mxu0 0.0
        %1666 = vmatprep.subr.mxu0 0.0
        %1667 = vmatpush1.msra.mxu0 0.0
        %1668 = vmatprep.subr.mxu0 0.0
        %1669 = vmatpush1.msra.mxu0 0.0
        %1670 = vmatprep.subr.mxu0 0.0
        %1671 = vmatpush1.msra.mxu0 0.0
        %1672 = vmatprep.subr.mxu0 0.0
        %1673 = vmatpush1.msra.mxu0 0.0
        %1674 = vmatprep.subr.mxu0 0.0
        %1675 = vmatpush1.msra.mxu0 0.0
        %1676 = vmatprep.mubr.f32.mxu0 0.0
        %1677 = vmatmul.mubr.f32.gmra.mrb[0].mxu0 %v1557
        %v1678 = vpop.f32.mrb[0].mxu0
        %v1679 = vadd.f32 %v1610, %v1678
        %v1680 = vpop.f32.mrb[0].mxu0
        %1681 = vmatprep.mubr.f32.mxu0 0.0
        %1682 = vmatmul.mubr.f32.gmra.mrb[0].mxu0 %v1558
        %v1683 = vpop.f32.mrb[0].mxu0
        %v1684 = vadd.f32 %v1610, %v1683
        %v1685 = vpop.f32.mrb[0].mxu0
        %1686 = vmatprep.mubr.f32.mxu0 0.0
        %1687 = vmatmul.mubr.f32.gmra.mrb[0].mxu0 %v1559
        %v1688 = vpop.f32.mrb[0].mxu0
        %v1689 = vadd.f32 %v1610, %v1688
        %v1690 = vpop.f32.mrb[0].mxu0
        %1691 = vmatprep.mubr.f32.mxu0 0.0
        %1692 = vmatmul.mubr.f32.gmra.mrb[0].mxu0 %v1560
        %v1693 = vpop.f32.mrb[0].mxu0
        %v1694 = vadd.f32 %v1610, %v1693
        %v1695 = vpop.f32.mrb[0].mxu0
        %1696 = vmatprep.mubr.f32.mxu0 0.0
        %1697 = vmatmul.mubr.f32.gmra.mrb[0].mxu0 %v1561
        %v1698 = vpop.f32.mrb[0].mxu0
        %v1699 = vadd.f32 %v1610, %v1698
        %v1700 = vpop.f32.mrb[0].mxu0
        %1701 = vmatprep.mubr.f32.mxu0 0.0
        %1702 = vmatmul.mubr.f32.gmra.mrb[0].mxu0 %v1562
        %v1703 = vpop.f32.mrb[0].mxu0
        %v1704 = vadd.f32 %v1610, %v1703
        %v1705 = vpop.f32.mrb[0].mxu0
        %1706 = vmatprep.mubr.f32.mxu0 0.0
        %1707 = vmatmul.mubr.f32.gmra.mrb[0].mxu0 %v1563
        %v1708 = vpop.f32.mrb[0].mxu0
        %v1709 = vadd.f32 %v1610, %v1708
        %v1710 = vpop.f32.mrb[0].mxu0
        %1711 = vmatprep.mubr.f32.mxu0 0.0
        %1712 = vmatmul.mubr.f32.gmra.mrb[0].mxu0 %v1564
        %v1713 = vpop.f32.mrb[0].mxu0
        %v1714 = vadd.f32 %v1610, %v1713
        %v1715 = vpop.f32.mrb[0].mxu0
        %1716 = vmatprep.mubr.f32.mxu0 0.0
        %1717 = vmatmul.mubr.f32.gmra.mrb[0].mxu0 %v1565
        %v1718 = vpop.f32.mrb[0].mxu0
        %v1719 = vadd.f32 %v1610, %v1718
        %v1720 = vpop.f32.mrb[0].mxu0
        %1721 = vmatprep.mubr.f32.mxu0 0.0
        %1722 = vmatmul.mubr.f32.gmra.mrb[0].mxu0 %v1566
        %v1723 = vpop.f32.mrb[0].mxu0
        %v1724 = vadd.f32 %v1610, %v1723
        %v1725 = vpop.f32.mrb[0].mxu0
        %1726 = vmatprep.mubr.f32.mxu0 0.0
        %1727 = vmatmul.mubr.f32.gmra.mrb[0].mxu0 %v1567
        %v1728 = vpop.f32.mrb[0].mxu0
        %v1729 = vadd.f32 %v1610, %v1728
        %v1730 = vpop.f32.mrb[0].mxu0
        %1731 = vmatprep.mubr.f32.mxu0 0.0
        %1732 = vmatmul.mubr.f32.gmra.mrb[0].mxu0 %v1568
        %v1733 = vpop.f32.mrb[0].mxu0
        %v1734 = vadd.f32 %v1610, %v1733
        %v1735 = vpop.f32.mrb[0].mxu0
        %1736 = vmatprep.mubr.f32.mxu0 0.0
        %1737 = vmatmul.mubr.f32.gmra.mrb[0].mxu0 %v1569
        %v1738 = vpop.f32.mrb[0].mxu0
        %v1739 = vadd.f32 %v1610, %v1738
        %v1740 = vpop.f32.mrb[0].mxu0
        %1741 = vmatprep.mubr.f32.mxu0 0.0
        %1742 = vmatmul.mubr.f32.gmra.mrb[0].mxu0 %v1570
        %v1743 = vpop.f32.mrb[0].mxu0
        %v1744 = vadd.f32 %v1610, %v1743
        %v1745 = vpop.f32.mrb[0].mxu0
        %1746 = vmatprep.mubr.f32.mxu0 0.0
        %1747 = vmatmul.mubr.f32.gmra.mrb[0].mxu0 %v1571
        %v1748 = vpop.f32.mrb[0].mxu0
        %v1749 = vadd.f32 %v1610, %v1748
        %v1750 = vpop.f32.mrb[0].mxu0
        %1751 = vmatprep.mubr.f32.mxu0 0.0
        %1752 = vmatmul.mubr.f32.gmra.mrb[0].mxu0 %v1572
        %v1753 = vpop.f32.mrb[0].mxu0
        %v1754 = vadd.f32 %v1610, %v1753
        %v1755 = vpop.f32.mrb[0].mxu0
        %1756 = vmatprep.mubr.f32.mxu0 0.0
        %1757 = vmatmul.mubr.f32.gmra.mrb[0].mxu0 %v1573
        %v1758 = vpop.f32.mrb[0].mxu0
        %v1759 = vadd.f32 %v1610, %v1758
        %v1760 = vpop.f32.mrb[0].mxu0
        %1761 = vmatprep.mubr.f32.mxu0 0.0
        %1762 = vmatmul.mubr.f32.gmra.mrb[0].mxu0 %v1574
        %v1763 = vpop.f32.mrb[0].mxu0
        %v1764 = vadd.f32 %v1610, %v1763
        %v1765 = vpop.f32.mrb[0].mxu0
        %1766 = vmatprep.mubr.f32.mxu0 0.0
        %1767 = vmatmul.mubr.f32.gmra.mrb[0].mxu0 %v1575
        %v1768 = vpop.f32.mrb[0].mxu0
        %v1769 = vadd.f32 %v1610, %v1768
        %v1770 = vpop.f32.mrb[0].mxu0
        %1771 = vmatprep.mubr.f32.mxu0 0.0
        %1772 = vmatmul.mubr.f32.gmra.mrb[0].mxu0 %v1576
        %v1773 = vpop.f32.mrb[0].mxu0
        %v1774 = vadd.f32 %v1610, %v1773
        %v1775 = vpop.f32.mrb[0].mxu0
        %1776 = vmatprep.mubr.f32.mxu0 0.0
        %1777 = vmatmul.mubr.f32.gmra.mrb[0].mxu0 %v1577
        %v1778 = vpop.f32.mrb[0].mxu0
        %v1779 = vadd.f32 %v1610, %v1778
        %v1780 = vpop.f32.mrb[0].mxu0
        %1781 = vmatprep.mubr.f32.mxu0 0.0
        %1782 = vmatmul.mubr.f32.gmra.mrb[0].mxu0 %v1578
        %v1783 = vpop.f32.mrb[0].mxu0
        %v1784 = vadd.f32 %v1610, %v1783
        %v1785 = vpop.f32.mrb[0].mxu0
        %1786 = vmatprep.mubr.f32.mxu0 0.0
        %1787 = vmatmul.mubr.f32.gmra.mrb[0].mxu0 %v1579
        %v1788 = vpop.f32.mrb[0].mxu0
        %v1789 = vadd.f32 %v1610, %v1788
        %v1790 = vpop.f32.mrb[0].mxu0
        %1791 = vmatprep.mubr.f32.mxu0 0.0
        %1792 = vmatmul.mubr.f32.gmra.mrb[0].mxu0 %v1580
        %v1793 = vpop.f32.mrb[0].mxu0
        %v1794 = vadd.f32 %v1610, %v1793
        %v1795 = vpop.f32.mrb[0].mxu0
        %1796 = vmatprep.mubr.f32.mxu0 0.0
        %1797 = vmatmul.mubr.f32.gmra.mrb[0].mxu0 %v1581
        %v1798 = vpop.f32.mrb[0].mxu0
        %v1799 = vadd.f32 %v1610, %v1798
        %v1800 = vpop.f32.mrb[0].mxu0
        %1801 = vmatprep.mubr.f32.mxu0 0.0
        %1802 = vmatmul.mubr.f32.gmra.mrb[0].mxu0 %v1582
        %v1803 = vpop.f32.mrb[0].mxu0
        %v1804 = vadd.f32 %v1610, %v1803
        %v1805 = vpop.f32.mrb[0].mxu0
        %1806 = vmatprep.mubr.f32.mxu0 0.0
        %1807 = vmatmul.mubr.f32.gmra.mrb[0].mxu0 %v1583
        %v1808 = vpop.f32.mrb[0].mxu0
        %v1809 = vadd.f32 %v1610, %v1808
        %v1810 = vpop.f32.mrb[0].mxu0
        %1811 = vmatprep.mubr.f32.mxu0 0.0
        %1812 = vmatmul.mubr.f32.gmra.mrb[0].mxu0 %v1584
        %v1813 = vpop.f32.mrb[0].mxu0
        %v1814 = vadd.f32 %v1610, %v1813
        %v1815 = vpop.f32.mrb[0].mxu0
        %1816 = vmatprep.mubr.f32.mxu0 0.0
        %1817 = vmatmul.mubr.f32.gmra.mrb[0].mxu0 %v1585
        %v1818 = vpop.f32.mrb[0].mxu0
        %v1819 = vadd.f32 %v1610, %v1818
        %v1820 = vpop.f32.mrb[0].mxu0
        %1821 = vmatprep.mubr.f32.mxu0 0.0
        %1822 = vmatmul.mubr.f32.gmra.mrb[0].mxu0 %v1586
        %v1823 = vpop.f32.mrb[0].mxu0
        %v1824 = vadd.f32 %v1610, %v1823
        %v1825 = vpop.f32.mrb[0].mxu0
        %1826 = vmatprep.mubr.f32.mxu0 0.0
        %1827 = vmatmul.mubr.f32.gmra.mrb[0].mxu0 %v1587
        %v1828 = vpop.f32.mrb[0].mxu0
        %v1829 = vadd.f32 %v1610, %v1828
        %v1830 = vpop.f32.mrb[0].mxu0
        %1831 = vmatprep.mubr.f32.mxu0 0.0
        %1832 = vmatmul.mubr.f32.gmra.mrb[0].mxu0 %v1588
        %v1833 = vpop.f32.mrb[0].mxu0
        %v1834 = vadd.f32 %v1610, %v1833
        %v1835 = vpop.f32.mrb[0].mxu0
        %1836 = vdwg.mxu0
        %v1837 = vmin.f32 %v1679, 0.0
        %v1838 = vmin.f32 %v1684, 0.0
        %v1839 = vmin.f32 %v1689, 0.0
        %v1840 = vmin.f32 %v1694, 0.0
        %v1841 = vmin.f32 %v1699, 0.0
        %v1842 = vmin.f32 %v1704, 0.0
        %v1843 = vmin.f32 %v1709, 0.0
        %v1844 = vmin.f32 %v1714, 0.0
        %v1845 = vmin.f32 %v1719, 0.0
        %v1846 = vmin.f32 %v1724, 0.0
        %v1847 = vmin.f32 %v1729, 0.0
        %v1848 = vmin.f32 %v1734, 0.0
        %v1849 = vmin.f32 %v1739, 0.0
        %v1850 = vmin.f32 %v1744, 0.0
        %v1851 = vmin.f32 %v1749, 0.0
        %v1852 = vmin.f32 %v1754, 0.0
        %v1853 = vmin.f32 %v1759, 0.0
        %v1854 = vmin.f32 %v1764, 0.0
        %v1855 = vmin.f32 %v1769, 0.0
        %v1856 = vmin.f32 %v1774, 0.0
        %v1857 = vmin.f32 %v1779, 0.0
        %v1858 = vmin.f32 %v1784, 0.0
        %v1859 = vmin.f32 %v1789, 0.0
        %v1860 = vmin.f32 %v1794, 0.0
        %v1861 = vmin.f32 %v1799, 0.0
        %v1862 = vmin.f32 %v1804, 0.0
        %v1863 = vmin.f32 %v1809, 0.0
        %v1864 = vmin.f32 %v1814, 0.0
        %v1865 = vmin.f32 %v1819, 0.0
        %v1866 = vmin.f32 %v1824, 0.0
        %v1867 = vmin.f32 %v1829, 0.0
        %v1868 = vmin.f32 %v1834, 0.0
        %v1869 = vmul.f32 %v1837, 1.442695
        %v1870 = vpow.pop %v1869
        %v1871 = vmul.f32 %v1838, 1.442695
        %v1872 = vpow.pop %v1871
        %v1873 = vmul.f32 %v1839, 1.442695
        %v1874 = vpow.pop %v1873
        %v1875 = vmul.f32 %v1840, 1.442695
        %v1876 = vpow.pop %v1875
        %v1877 = vmul.f32 %v1841, 1.442695
        %v1878 = vpow.pop %v1877
        %v1879 = vmul.f32 %v1842, 1.442695
        %v1880 = vpow.pop %v1879
        %v1881 = vmul.f32 %v1843, 1.442695
        %v1882 = vpow.pop %v1881
        %v1883 = vmul.f32 %v1844, 1.442695
        %v1884 = vpow.pop %v1883
        %v1885 = vmul.f32 %v1845, 1.442695
        %v1886 = vpow.pop %v1885
        %v1887 = vmul.f32 %v1846, 1.442695
        %v1888 = vpow.pop %v1887
        %v1889 = vmul.f32 %v1847, 1.442695
        %v1890 = vpow.pop %v1889
        %v1891 = vmul.f32 %v1848, 1.442695
        %v1892 = vpow.pop %v1891
        %v1893 = vmul.f32 %v1849, 1.442695
        %v1894 = vpow.pop %v1893
        %v1895 = vmul.f32 %v1850, 1.442695
        %v1896 = vpow.pop %v1895
        %v1897 = vmul.f32 %v1851, 1.442695
        %v1898 = vpow.pop %v1897
        %v1899 = vmul.f32 %v1852, 1.442695
        %v1900 = vpow.pop %v1899
        %v1901 = vmul.f32 %v1853, 1.442695
        %v1902 = vpow.pop %v1901
        %v1903 = vmul.f32 %v1854, 1.442695
        %v1904 = vpow.pop %v1903
        %v1905 = vmul.f32 %v1855, 1.442695
        %v1906 = vpow.pop %v1905
        %v1907 = vmul.f32 %v1856, 1.442695
        %v1908 = vpow.pop %v1907
        %v1909 = vmul.f32 %v1857, 1.442695
        %v1910 = vpow.pop %v1909
        %v1911 = vmul.f32 %v1858, 1.442695
        %v1912 = vpow.pop %v1911
        %v1913 = vmul.f32 %v1859, 1.442695
        %v1914 = vpow.pop %v1913
        %v1915 = vmul.f32 %v1860, 1.442695
        %v1916 = vpow.pop %v1915
        %v1917 = vmul.f32 %v1861, 1.442695
        %v1918 = vpow.pop %v1917
        %v1919 = vmul.f32 %v1862, 1.442695
        %v1920 = vpow.pop %v1919
        %v1921 = vmul.f32 %v1863, 1.442695
        %v1922 = vpow.pop %v1921
        %v1923 = vmul.f32 %v1864, 1.442695
        %v1924 = vpow.pop %v1923
        %v1925 = vmul.f32 %v1865, 1.442695
        %v1926 = vpow.pop %v1925
        %v1927 = vmul.f32 %v1866, 1.442695
        %v1928 = vpow.pop %v1927
        %v1929 = vmul.f32 %v1867, 1.442695
        %v1930 = vpow.pop %v1929
        %v1931 = vmul.f32 %v1868, 1.442695
        %v1932 = vpow.pop %v1931
        %v1933 = vsub.f32 %v1870, 1.0
        %v1934 = vsub.f32 %v1872, 1.0
        %v1935 = vsub.f32 %v1874, 1.0
        %v1936 = vsub.f32 %v1876, 1.0
        %v1937 = vsub.f32 %v1878, 1.0
        %v1938 = vsub.f32 %v1880, 1.0
        %v1939 = vsub.f32 %v1882, 1.0
        %v1940 = vsub.f32 %v1884, 1.0
        %v1941 = vsub.f32 %v1886, 1.0
        %v1942 = vsub.f32 %v1888, 1.0
        %v1943 = vsub.f32 %v1890, 1.0
        %v1944 = vsub.f32 %v1892, 1.0
        %v1945 = vsub.f32 %v1894, 1.0
        %v1946 = vsub.f32 %v1896, 1.0
        %v1947 = vsub.f32 %v1898, 1.0
        %v1948 = vsub.f32 %v1900, 1.0
        %v1949 = vsub.f32 %v1902, 1.0
        %v1950 = vsub.f32 %v1904, 1.0
        %v1951 = vsub.f32 %v1906, 1.0
        %v1952 = vsub.f32 %v1908, 1.0
        %v1953 = vsub.f32 %v1910, 1.0
        %v1954 = vsub.f32 %v1912, 1.0
        %v1955 = vsub.f32 %v1914, 1.0
        %v1956 = vsub.f32 %v1916, 1.0
        %v1957 = vsub.f32 %v1918, 1.0
        %v1958 = vsub.f32 %v1920, 1.0
        %v1959 = vsub.f32 %v1922, 1.0
        %v1960 = vsub.f32 %v1924, 1.0
        %v1961 = vsub.f32 %v1926, 1.0
        %v1962 = vsub.f32 %v1928, 1.0
        %v1963 = vsub.f32 %v1930, 1.0
        %v1964 = vsub.f32 %v1932, 1.0
        %v1965 = vmul.f32 %v1933, 1.6732632
        %v1966 = vmul.f32 %v1934, 1.6732632
        %v1967 = vmul.f32 %v1935, 1.6732632
        %v1968 = vmul.f32 %v1936, 1.6732632
        %v1969 = vmul.f32 %v1937, 1.6732632
        %v1970 = vmul.f32 %v1938, 1.6732632
        %v1971 = vmul.f32 %v1939, 1.6732632
        %v1972 = vmul.f32 %v1940, 1.6732632
        %v1973 = vmul.f32 %v1941, 1.6732632
        %v1974 = vmul.f32 %v1942, 1.6732632
        %v1975 = vmul.f32 %v1943, 1.6732632
        %v1976 = vmul.f32 %v1944, 1.6732632
        %v1977 = vmul.f32 %v1945, 1.6732632
        %v1978 = vmul.f32 %v1946, 1.6732632
        %v1979 = vmul.f32 %v1947, 1.6732632
        %v1980 = vmul.f32 %v1948, 1.6732632
        %v1981 = vmul.f32 %v1949, 1.6732632
        %v1982 = vmul.f32 %v1950, 1.6732632
        %v1983 = vmul.f32 %v1951, 1.6732632
        %v1984 = vmul.f32 %v1952, 1.6732632
        %v1985 = vmul.f32 %v1953, 1.6732632
        %v1986 = vmul.f32 %v1954, 1.6732632
        %v1987 = vmul.f32 %v1955, 1.6732632
        %v1988 = vmul.f32 %v1956, 1.6732632
        %v1989 = vmul.f32 %v1957, 1.6732632
        %v1990 = vmul.f32 %v1958, 1.6732632
        %v1991 = vmul.f32 %v1959, 1.6732632
        %v1992 = vmul.f32 %v1960, 1.6732632
        %v1993 = vmul.f32 %v1961, 1.6732632
        %v1994 = vmul.f32 %v1962, 1.6732632
        %v1995 = vmul.f32 %v1963, 1.6732632
        %v1996 = vmul.f32 %v1964, 1.6732632
        %vm1997 = vcmp.gt.f32.partialorder %v1679, 0.0
        %vm1998 = vcmp.gt.f32.partialorder %v1684, 0.0
        %vm1999 = vcmp.gt.f32.partialorder %v1689, 0.0
        %vm2000 = vcmp.gt.f32.partialorder %v1694, 0.0
        %vm2001 = vcmp.gt.f32.partialorder %v1699, 0.0
        %vm2002 = vcmp.gt.f32.partialorder %v1704, 0.0
        %vm2003 = vcmp.gt.f32.partialorder %v1709, 0.0
        %vm2004 = vcmp.gt.f32.partialorder %v1714, 0.0
        %vm2005 = vcmp.gt.f32.partialorder %v1719, 0.0
        %vm2006 = vcmp.gt.f32.partialorder %v1724, 0.0
        %vm2007 = vcmp.gt.f32.partialorder %v1729, 0.0
        %vm2008 = vcmp.gt.f32.partialorder %v1734, 0.0
        %vm2009 = vcmp.gt.f32.partialorder %v1739, 0.0
        %vm2010 = vcmp.gt.f32.partialorder %v1744, 0.0
        %vm2011 = vcmp.gt.f32.partialorder %v1749, 0.0
        %vm2012 = vcmp.gt.f32.partialorder %v1754, 0.0
        %vm2013 = vcmp.gt.f32.partialorder %v1759, 0.0
        %vm2014 = vcmp.gt.f32.partialorder %v1764, 0.0
        %vm2015 = vcmp.gt.f32.partialorder %v1769, 0.0
        %vm2016 = vcmp.gt.f32.partialorder %v1774, 0.0
        %vm2017 = vcmp.gt.f32.partialorder %v1779, 0.0
        %vm2018 = vcmp.gt.f32.partialorder %v1784, 0.0
        %vm2019 = vcmp.gt.f32.partialorder %v1789, 0.0
        %vm2020 = vcmp.gt.f32.partialorder %v1794, 0.0
        %vm2021 = vcmp.gt.f32.partialorder %v1799, 0.0
        %vm2022 = vcmp.gt.f32.partialorder %v1804, 0.0
        %vm2023 = vcmp.gt.f32.partialorder %v1809, 0.0
        %vm2024 = vcmp.gt.f32.partialorder %v1814, 0.0
        %vm2025 = vcmp.gt.f32.partialorder %v1819, 0.0
        %vm2026 = vcmp.gt.f32.partialorder %v1824, 0.0
        %vm2027 = vcmp.gt.f32.partialorder %v1829, 0.0
        %vm2028 = vcmp.gt.f32.partialorder %v1834, 0.0
        %v2029 = vsel %vm1997, %v1679, %v1965
        %v2030 = vsel %vm1998, %v1684, %v1966
        %v2031 = vsel %vm1999, %v1689, %v1967
        %v2032 = vsel %vm2000, %v1694, %v1968
        %v2033 = vsel %vm2001, %v1699, %v1969
        %v2034 = vsel %vm2002, %v1704, %v1970
        %v2035 = vsel %vm2003, %v1709, %v1971
        %v2036 = vsel %vm2004, %v1714, %v1972
        %v2037 = vsel %vm2005, %v1719, %v1973
        %v2038 = vsel %vm2006, %v1724, %v1974
        %v2039 = vsel %vm2007, %v1729, %v1975
        %v2040 = vsel %vm2008, %v1734, %v1976
        %v2041 = vsel %vm2009, %v1739, %v1977
        %v2042 = vsel %vm2010, %v1744, %v1978
        %v2043 = vsel %vm2011, %v1749, %v1979
        %v2044 = vsel %vm2012, %v1754, %v1980
        %v2045 = vsel %vm2013, %v1759, %v1981
        %v2046 = vsel %vm2014, %v1764, %v1982
        %v2047 = vsel %vm2015, %v1769, %v1983
        %v2048 = vsel %vm2016, %v1774, %v1984
        %v2049 = vsel %vm2017, %v1779, %v1985
        %v2050 = vsel %vm2018, %v1784, %v1986
        %v2051 = vsel %vm2019, %v1789, %v1987
        %v2052 = vsel %vm2020, %v1794, %v1988
        %v2053 = vsel %vm2021, %v1799, %v1989
        %v2054 = vsel %vm2022, %v1804, %v1990
        %v2055 = vsel %vm2023, %v1809, %v1991
        %v2056 = vsel %vm2024, %v1814, %v1992
        %v2057 = vsel %vm2025, %v1819, %v1993
        %v2058 = vsel %vm2026, %v1824, %v1994
        %v2059 = vsel %vm2027, %v1829, %v1995
        %v2060 = vsel %vm2028, %v1834, %v1996
        %v2061 = vmul.f32 %v2029, 1.050701
        %v2062 = vmul.f32 %v2030, 1.050701
        %v2063 = vmul.f32 %v2031, 1.050701
        %v2064 = vmul.f32 %v2032, 1.050701
        %v2065 = vmul.f32 %v2033, 1.050701
        %v2066 = vmul.f32 %v2034, 1.050701
        %v2067 = vmul.f32 %v2035, 1.050701
        %v2068 = vmul.f32 %v2036, 1.050701
        %v2069 = vmul.f32 %v2037, 1.050701
        %v2070 = vmul.f32 %v2038, 1.050701
        %v2071 = vmul.f32 %v2039, 1.050701
        %v2072 = vmul.f32 %v2040, 1.050701
        %v2073 = vmul.f32 %v2041, 1.050701
        %v2074 = vmul.f32 %v2042, 1.050701
        %v2075 = vmul.f32 %v2043, 1.050701
        %v2076 = vmul.f32 %v2044, 1.050701
        %v2077 = vmul.f32 %v2045, 1.050701
        %v2078 = vmul.f32 %v2046, 1.050701
        %v2079 = vmul.f32 %v2047, 1.050701
        %v2080 = vmul.f32 %v2048, 1.050701
        %v2081 = vmul.f32 %v2049, 1.050701
        %v2082 = vmul.f32 %v2050, 1.050701
        %v2083 = vmul.f32 %v2051, 1.050701
        %v2084 = vmul.f32 %v2052, 1.050701
        %v2085 = vmul.f32 %v2053, 1.050701
        %v2086 = vmul.f32 %v2054, 1.050701
        %v2087 = vmul.f32 %v2055, 1.050701
        %v2088 = vmul.f32 %v2056, 1.050701
        %v2089 = vmul.f32 %v2057, 1.050701
        %v2090 = vmul.f32 %v2058, 1.050701
        %v2091 = vmul.f32 %v2059, 1.050701
        %v2092 = vmul.f32 %v2060, 1.050701
        %2093 = vst [vmem:[%s313] sm:$0xff] %v2061
        %2094 = vst [vmem:[%s313 + $0x8] sm:$0xff] %v2062
        %2095 = vst [vmem:[%s313 + $0x10] sm:$0xff] %v2063
        %2096 = vst [vmem:[%s313 + $0x18] sm:$0xff] %v2064
        %2097 = vst [vmem:[%s313 + $0x20] sm:$0xff] %v2065
        %2098 = vst [vmem:[%s313 + $0x28] sm:$0xff] %v2066
        %2099 = vst [vmem:[%s313 + $0x30] sm:$0xff] %v2067
        %2100 = vst [vmem:[%s313 + $0x38] sm:$0xff] %v2068
        %2101 = vst [vmem:[%s313 + $0x40] sm:$0xff] %v2069
        %2102 = vst [vmem:[%s313 + $0x48] sm:$0xff] %v2070
        %2103 = vst [vmem:[%s313 + $0x50] sm:$0xff] %v2071
        %2104 = vst [vmem:[%s313 + $0x58] sm:$0xff] %v2072
        %2105 = vst [vmem:[%s313 + $0x60] sm:$0xff] %v2073
        %2106 = vst [vmem:[%s313 + $0x68] sm:$0xff] %v2074
        %2107 = vst [vmem:[%s313 + $0x70] sm:$0xff] %v2075
        %2108 = vst [vmem:[%s313 + $0x78] sm:$0xff] %v2076
        %2109 = vst [vmem:[%s313 + $0x80] sm:$0xff] %v2077
        %2110 = vst [vmem:[%s313 + $0x88] sm:$0xff] %v2078
        %2111 = vst [vmem:[%s313 + $0x90] sm:$0xff] %v2079
        %2112 = vst [vmem:[%s313 + $0x98] sm:$0xff] %v2080
        %2113 = vst [vmem:[%s313 + $0xa0] sm:$0xff] %v2081
        %2114 = vst [vmem:[%s313 + $0xa8] sm:$0xff] %v2082
        %2115 = vst [vmem:[%s313 + $0xb0] sm:$0xff] %v2083
        %2116 = vst [vmem:[%s313 + $0xb8] sm:$0xff] %v2084
        %2117 = vst [vmem:[%s313 + $0xc0] sm:$0xff] %v2085
        %2118 = vst [vmem:[%s313 + $0xc8] sm:$0xff] %v2086
        %2119 = vst [vmem:[%s313 + $0xd0] sm:$0xff] %v2087
        %2120 = vst [vmem:[%s313 + $0xd8] sm:$0xff] %v2088
        %2121 = vst [vmem:[%s313 + $0xe0] sm:$0xff] %v2089
        %2122 = vst [vmem:[%s313 + $0xe8] sm:$0xff] %v2090
        %2123 = vst [vmem:[%s313 + $0xf0] sm:$0xff] %v2091
        %2124 = vst [vmem:[%s313 + $0xf8] sm:$0xff] %v2092
        %s2125 = sand.u32 %s189, 1
        %s2126 = scalar_lea.sflag [#allocation4], %s2125
        %s2127 = sand.u32 %s189, 1
        %s2128 = smul.addr %s2127, 256
        %s2129 = scalar_lea.vmem [#allocation5], %s2128
        // Predicated region
        $region53: #{tpu_custom_call.1} parent=47 // pred_check
          %p2130 = pneg %p199
        $region54: #{tpu_custom_call.1} parent=47 // pred_check_branch
          %2132 = sbr.rel (%p2130) target = $region56
        $region55: #{tpu_custom_call.1} parent=47 // pred_region
          %s2133 = smul.u32 32, %s24
          %s2135 = ssub.s32 4096, 4096
          %2136 = vsyncadd %s2126, %s2135
          %s2137 = smul.addr %s2133, 128
          %s2138 = scalar_lea.hbm %s7, %s2137
          %s2139 = sshll.u32 %s2129, 4
          %s2140 = int_to_ptr.vmem [resolvable:$true] %s2139
          %2145 = dma.vmem_to_hbm [thread:$0]  %s2140, 4096, %s2138, %s2126, 128, 128, 8
        $region56: #{tpu_custom_call.1} parent=47 // pred_fallthru
          _
      $region48: #{tpu_custom_call.1} parent=5 // pred_fallthru
        _
      %p2146 = scmp.le.s32.totalorder 2, %s19
      // Predicated region
      $region57: #{tpu_custom_call.1} parent=5 // pred_check
        %p2147 = pneg %p2146
      $region58: #{tpu_custom_call.1} parent=5 // pred_check_branch
        %2149 = sbr.rel (%p2147) target = $region60
      $region59: #{tpu_custom_call.1} parent=5 // pred_region
        %s2150 = ssub.s32 %s19, 2
        // Predicated region
        $region61: #{tpu_custom_call.1} parent=59 // pred_check
          %p2151 = pneg %p205
        $region62: #{tpu_custom_call.1} parent=59 // pred_check_branch
          %2153 = sbr.rel (%p2151) target = $region64
        $region63: #{tpu_custom_call.1} parent=59 // pred_region
          %s2154 = sand.u32 %s190, 1
          %s2155 = scalar_lea.sflag [#allocation4], %s2154
          %s2156 = sand.u32 %s190, 1
          %s2157 = smul.addr %s2156, 256
          %s2158 = scalar_lea.vmem [#allocation5], %s2157
          %2159 = dma.done %s2155, 4096
        $region64: #{tpu_custom_call.1} parent=59 // pred_fallthru
          _
      $region60: #{tpu_custom_call.1} parent=5 // pred_fallthru
        _
    $region6: #{tpu_custom_call.1} parent=1 // loop_footer
      %s23 = sadd.s32 1, %s19
    $region7: #{tpu_custom_call.1} parent=1 // loop_footer_branch
      %18 = sbr.rel target = $region3
    $region8: #{tpu_custom_call.1} parent=1 // loop_exit
      _
    %2160 = vsyncpa [#allocation3], 1
    %s2161 = scalar_lea.sflag [#allocation3], 1
    %2162 = vsyncpa %s2161, 1
    %2163 = vsyncpa [#allocation4], 1
    %s2164 = scalar_lea.sflag [#allocation4], 1
    %2165 = vsyncpa %s2164, 1

</llo_original>
